<compile_context>
chip_gen: v7x
topology: tpu7x:2x2x1
jax: 0.10.0
libtpu: 0.0.40
codegen_flags: <defaults>
</compile_context>

<pallas_src>
import jax
import jax.numpy as jnp
import numpy as np
from jax import lax
from jax.experimental import pallas as pl
from jax.experimental.pallas import tpu as pltpu

HID1 = 128     # first MLP layer
HID2 = 256     # second MLP layer == LSTM input size
LSTM_H = 128   # LSTM hidden size


def _round_up(x, m):
    return ((x + m - 1) // m) * m


# ------------------------- fused Pallas kernel --------------------------------

def drqn_fused_kernel(x_ref, w1_ref, b1_ref, w2_ref, b2_ref,
                      wih_ref, whh_ref, bl_ref, wv_ref, bv_ref,
                      q_ref, hn_ref, cn_ref,
                      h2_scr, hs_scr):
    """Fused MLP body + LSTM + value head for one batch tile.

    x_ref  : (T*bt, D)    time-major rows (row = t*bt + b_local)
    q_ref  : (T*bt, Apad) lane-dense padded Q output
    hn_ref : (bt, 128)    final hidden state   cn_ref: (bt, 128) final cell state
    """
    rows = x_ref.shape[0]
    bt = hn_ref.shape[0]
    T = rows // bt

    # ---- MLP body: one batched matmul over all T*bt rows (M = T*bt, not B) ----
    h1 = jnp.maximum(
        jnp.dot(x_ref[...], w1_ref[...], preferred_element_type=jnp.float32)
        + b1_ref[...], 0.0)
    h2_scr[...] = jnp.maximum(
        jnp.dot(h1, w2_ref[...], preferred_element_type=jnp.float32)
        + b2_ref[...], 0.0)

    # ---- hoisted loop invariants (no per-iteration broadcast_in_dim) ----
    w_ih = wih_ref[...]
    w_hh = whh_ref[...]
    b_gates = jnp.broadcast_to(bl_ref[...], (bt, 4 * LSTM_H))

    # ---- LSTM recurrence: in-kernel fori_loop, (h, c) carried as values ----
    def step(t, carry):
        h, c = carry
        r0 = pl.multiple_of(t * bt, 8)            # bt is a multiple of 8
        xt = h2_scr[pl.ds(r0, bt), :]             # (bt, 256)
        gates = (jnp.dot(xt, w_ih, preferred_element_type=jnp.float32)
                 + jnp.dot(h, w_hh, preferred_element_type=jnp.float32)
                 + b_gates)                       # (bt, 512) torch order i,f,g,o
        i_g = jax.nn.sigmoid(gates[:, 0 * LSTM_H:1 * LSTM_H])
        f_g = jax.nn.sigmoid(gates[:, 1 * LSTM_H:2 * LSTM_H])
        g_g = jnp.tanh(gates[:, 2 * LSTM_H:3 * LSTM_H])
        o_g = jax.nn.sigmoid(gates[:, 3 * LSTM_H:4 * LSTM_H])
        c_new = f_g * c + i_g * g_g
        h_new = o_g * jnp.tanh(c_new)
        hs_scr[pl.ds(r0, bt), :] = h_new          # stash hidden state for value head
        return h_new, c_new

    h0 = jnp.zeros((bt, LSTM_H), jnp.float32)
    c0 = jnp.zeros((bt, LSTM_H), jnp.float32)
    h_fin, c_fin = lax.fori_loop(0, T, step, (h0, c0))

    hn_ref[...] = h_fin                           # written once, after the loop
    cn_ref[...] = c_fin

    # ---- value head: ONE lane-dense matmul over all T*bt hidden states ----
    q_ref[...] = (jnp.dot(hs_scr[...], wv_ref[...],
                          preferred_element_type=jnp.float32)
                  + bv_ref[...])


# ------------------------- wrapper -------------------------------------------

@jax.jit
def drqn_mlp_forward(x, params):
    """x: [B, T, D] float32. Returns (q_values [B,T,A], (h_n, c_n) each [1,B,128])."""
    B, T, D = x.shape
    A = params["wv"].shape[1]
    Apad = _round_up(A, 128)            # lane-dense q output / wv tile
    Bp = _round_up(max(B, 8), 8)        # pad batch to a sublane multiple
    nb = 2 if (Bp % 16 == 0) else 1     # 2 batch tiles -> "parallel" axis (2 TCs)
    bt = Bp // nb                       # multiple of 8 by construction

    # (B,T,D) -> pad batch -> (nb,bt,T,D) -> (nb,T,bt,D) -> (nb, T*bt, D)
    x_p = jnp.pad(x.astype(jnp.float32), ((0, Bp - B), (0, 0), (0, 0)))
    x_tiles = (x_p.reshape(nb, bt, T, D)
                  .transpose(0, 2, 1, 3)
                  .reshape(nb, T * bt, D))

    wv_pad = jnp.pad(params["wv"], ((0, 0), (0, Apad - A)))
    bv_pad = jnp.pad(params["bv"], ((0, 0), (0, Apad - A)))

    q_tiles, hn_p, cn_p = pl.pallas_call(
        drqn_fused_kernel,
        out_shape=(
            jax.ShapeDtypeStruct((nb, T * bt, Apad), jnp.float32),
            jax.ShapeDtypeStruct((Bp, LSTM_H), jnp.float32),
            jax.ShapeDtypeStruct((Bp, LSTM_H), jnp.float32),
        ),
        grid_spec=pltpu.PrefetchScalarGridSpec(
            num_scalar_prefetch=0,
            grid=(nb,),
            in_specs=[
                pl.BlockSpec((None, T * bt, D), lambda i: (i, 0, 0)),
                pl.BlockSpec((D, HID1), lambda i: (0, 0)),
                pl.BlockSpec((1, HID1), lambda i: (0, 0)),
                pl.BlockSpec((HID1, HID2), lambda i: (0, 0)),
                pl.BlockSpec((1, HID2), lambda i: (0, 0)),
                pl.BlockSpec((HID2, 4 * LSTM_H), lambda i: (0, 0)),
                pl.BlockSpec((LSTM_H, 4 * LSTM_H), lambda i: (0, 0)),
                pl.BlockSpec((1, 4 * LSTM_H), lambda i: (0, 0)),
                pl.BlockSpec((LSTM_H, Apad), lambda i: (0, 0)),
                pl.BlockSpec((1, Apad), lambda i: (0, 0)),
            ],
            out_specs=(
                pl.BlockSpec((None, T * bt, Apad), lambda i: (i, 0, 0)),
                pl.BlockSpec((bt, LSTM_H), lambda i: (i, 0)),
                pl.BlockSpec((bt, LSTM_H), lambda i: (i, 0)),
            ),
            scratch_shapes=[
                pltpu.VMEM((T * bt, HID2), jnp.float32),    # MLP body activations
                pltpu.VMEM((T * bt, LSTM_H), jnp.float32),  # all LSTM hidden states
            ],
        ),
        compiler_params=pltpu.CompilerParams(
            dimension_semantics=("parallel",)),   # batch tiles are independent
    )(x_tiles, params["w1"], params["b1"], params["w2"], params["b2"],
      params["w_ih"], params["w_hh"], params["b_lstm"], wv_pad, bv_pad)

    # un-tile / un-pad: (nb,T*bt,Apad) -> (Bp,T,Apad) -> (B,T,A)
    q_values = (q_tiles.reshape(nb, T, bt, Apad)
                       .transpose(0, 2, 1, 3)
                       .reshape(Bp, T, Apad))[:B, :, :A]
    h_n = hn_p[:B][None]                  # (num_layers=1, B, 128)
    c_n = cn_p[:B][None]
    return q_values, (h_n, c_n)


# ------------------------- pure-JAX reference ---------------------------------

def reference_forward(x, p):
    B, T, D = x.shape
    xb = x.reshape(B * T, D)
    h1 = jnp.maximum(xb @ p["w1"] + p["b1"], 0.0)
    h2 = jnp.maximum(h1 @ p["w2"] + p["b2"], 0.0)
    xs = h2.reshape(B, T, HID2).transpose(1, 0, 2)

    def step(carry, xt):
        h, c = carry
        gates = xt @ p["w_ih"] + h @ p["w_hh"] + p["b_lstm"][0]
        i = jax.nn.sigmoid(gates[:, 0 * LSTM_H:1 * LSTM_H])
        f = jax.nn.sigmoid(gates[:, 1 * LSTM_H:2 * LSTM_H])
        g = jnp.tanh(gates[:, 2 * LSTM_H:3 * LSTM_H])
        o = jax.nn.sigmoid(gates[:, 3 * LSTM_H:4 * LSTM_H])
        c = f * c + i * g
        h = o * jnp.tanh(c)
        return (h, c), h

    init = (jnp.zeros((B, LSTM_H), jnp.float32), jnp.zeros((B, LSTM_H), jnp.float32))
    (h, c), hs = lax.scan(step, init, xs)
    q = hs @ p["wv"] + p["bv"][0]
    return q.transpose(1, 0, 2), (h[None], c[None])


# ------------------------- parameter init -------------------------------------

def init_params(key, input_shape, num_actions):
    ks = jax.random.split(key, 12)

    def uni(k, shape, fan_in):
        bound = 1.0 / np.sqrt(fan_in)
        return jax.random.uniform(k, shape, jnp.float32, -bound, bound)

    # stored already transposed (in_features, out_features) for x @ W
    w1 = uni(ks[0], (input_shape, HID1), input_shape)
    b1 = uni(ks[1], (1, HID1), input_shape)
    w2 = uni(ks[2], (HID1, HID2), HID1)
    b2 = uni(ks[3], (1, HID2), HID1)
    # LSTM: torch layout is (4H, in) / (4H, H), gate order i,f,g,o; stored
    # transposed, with the two biases pre-summed.
    w_ih = uni(ks[4], (HID2, 4 * LSTM_H), LSTM_H)
    w_hh = uni(ks[5], (LSTM_H, 4 * LSTM_H), LSTM_H)
    b_ih = uni(ks[6], (1, 4 * LSTM_H), LSTM_H)
    b_hh = uni(ks[7], (1, 4 * LSTM_H), LSTM_H)
    wv = uni(ks[8], (LSTM_H, num_actions), LSTM_H)
    bv = uni(ks[9], (1, num_actions), LSTM_H)

    return dict(w1=w1, b1=b1, w2=w2, b2=b2,
                w_ih=w_ih, w_hh=w_hh, b_lstm=b_ih + b_hh,
                wv=wv, bv=bv)


# ------------------------- main ------------------------------------------------

if __name__ == "__main__":
    B, T, INPUT_SHAPE, NUM_ACTIONS = 2, 8, 16, 4

    key = jax.random.PRNGKey(0)
    k_params, k_x = jax.random.split(key)
    params = init_params(k_params, INPUT_SHAPE, NUM_ACTIONS)
    x = jax.random.normal(k_x, (B, T, INPUT_SHAPE), dtype=jnp.float32)

    q_values, (h_n, c_n) = drqn_mlp_forward(x, params)
    jax.block_until_ready(q_values)
    jax.block_until_ready(h_n)
    jax.block_until_ready(c_n)

    # verify against pure-JAX reference
    q_ref, (h_ref, c_ref) = reference_forward(x, params)
    np.testing.assert_allclose(np.asarray(q_values), np.asarray(q_ref), rtol=1e-5, atol=2e-5)
    np.testing.assert_allclose(np.asarray(h_n), np.asarray(h_ref), rtol=1e-5, atol=2e-5)
    np.testing.assert_allclose(np.asarray(c_n), np.asarray(c_ref), rtol=1e-5, atol=2e-5)

    assert q_values.shape == (B, T, NUM_ACTIONS)
    assert h_n.shape == (1, B, LSTM_H) and c_n.shape == (1, B, LSTM_H)
    print("KERNEL_OK")
</pallas_src>

<mosaic_0001>
module attributes {stable_mosaic.version = 11 : i64} {
  func.func @drqn_fused_kernel(%arg0: i32, %arg1: memref<1x64x16xf32, #tpu.memory_space<vmem>>, %arg2: memref<16x128xf32, #tpu.memory_space<vmem>>, %arg3: memref<1x128xf32, #tpu.memory_space<vmem>>, %arg4: memref<128x256xf32, #tpu.memory_space<vmem>>, %arg5: memref<1x256xf32, #tpu.memory_space<vmem>>, %arg6: memref<256x512xf32, #tpu.memory_space<vmem>>, %arg7: memref<128x512xf32, #tpu.memory_space<vmem>>, %arg8: memref<1x512xf32, #tpu.memory_space<vmem>>, %arg9: memref<128x128xf32, #tpu.memory_space<vmem>>, %arg10: memref<1x128xf32, #tpu.memory_space<vmem>>, %arg11: memref<1x64x128xf32, #tpu.memory_space<vmem>>, %arg12: memref<8x128xf32, #tpu.memory_space<vmem>>, %arg13: memref<8x128xf32, #tpu.memory_space<vmem>>, %arg14: memref<64x256xf32, #tpu.memory_space<vmem>>, %arg15: memref<64x128xf32, #tpu.memory_space<vmem>>) attributes {dimension_semantics = [#tpu.dimension_semantics<parallel>], iteration_bounds = array<i64: 1>, scalar_prefetch = 0 : i64, scratch_operands = 2 : i64, tpu.core_type = #tpu.core_type<tc>, window_params = [{transform_indices = @transform_0, window_bounds = array<i64: 1, 64, 16>}, {pipeline_mode = #tpu.pipeline_mode<synchronous>, transform_indices = @transform_1, window_bounds = array<i64: 16, 128>}, {pipeline_mode = #tpu.pipeline_mode<synchronous>, transform_indices = @transform_2, window_bounds = array<i64: 1, 128>}, {pipeline_mode = #tpu.pipeline_mode<synchronous>, transform_indices = @transform_3, window_bounds = array<i64: 128, 256>}, {pipeline_mode = #tpu.pipeline_mode<synchronous>, transform_indices = @transform_4, window_bounds = array<i64: 1, 256>}, {pipeline_mode = #tpu.pipeline_mode<synchronous>, transform_indices = @transform_5, window_bounds = array<i64: 256, 512>}, {pipeline_mode = #tpu.pipeline_mode<synchronous>, transform_indices = @transform_6, window_bounds = array<i64: 128, 512>}, {pipeline_mode = #tpu.pipeline_mode<synchronous>, transform_indices = @transform_7, window_bounds = array<i64: 1, 512>}, {pipeline_mode = #tpu.pipeline_mode<synchronous>, transform_indices = @transform_8, window_bounds = array<i64: 128, 128>}, {pipeline_mode = #tpu.pipeline_mode<synchronous>, transform_indices = @transform_9, window_bounds = array<i64: 1, 128>}, {transform_indices = @transform_10, window_bounds = array<i64: 1, 64, 128>}, {transform_indices = @transform_11, window_bounds = array<i64: 8, 128>}, {transform_indices = @transform_12, window_bounds = array<i64: 8, 128>}]} {
    %c0 = arith.constant 0 : index
    %c0_0 = arith.constant 0 : index
    %c0_1 = arith.constant 0 : index
    %0 = vector.load %arg1[%c0, %c0_0, %c0_1] : memref<1x64x16xf32, #tpu.memory_space<vmem>>, vector<1x64x16xf32>
    %1 = vector.shape_cast %0 : vector<1x64x16xf32> to vector<64x16xf32>
    %c0_2 = arith.constant 0 : index
    %c0_3 = arith.constant 0 : index
    %2 = vector.load %arg2[%c0_2, %c0_3] : memref<16x128xf32, #tpu.memory_space<vmem>>, vector<16x128xf32>
    %cst = arith.constant dense<0.000000e+00> : vector<64x128xf32>
    %3 = tpu.matmul %1, %2, %cst {dimension_numbers = #tpu.dot_dimension_numbers<[1], [0], [0], [1], [0, 0, 1, 1], [], []>} : vector<64x16xf32>, vector<16x128xf32>, vector<64x128xf32> -> vector<64x128xf32>
    %c0_4 = arith.constant 0 : index
    %c0_5 = arith.constant 0 : index
    %4 = vector.load %arg3[%c0_4, %c0_5] : memref<1x128xf32, #tpu.memory_space<vmem>>, vector<1x128xf32>
    %5 = vector.broadcast %4 : vector<1x128xf32> to vector<64x128xf32>
    %6 = arith.addf %3, %5 : vector<64x128xf32>
    %cst_6 = arith.constant 0.000000e+00 : f32
    %7 = vector.broadcast %cst_6 : f32 to vector<64x128xf32>
    %8 = arith.maximumf %6, %7 : vector<64x128xf32>
    %c0_7 = arith.constant 0 : index
    %c0_8 = arith.constant 0 : index
    %9 = vector.load %arg4[%c0_7, %c0_8] : memref<128x256xf32, #tpu.memory_space<vmem>>, vector<128x256xf32>
    %cst_9 = arith.constant dense<0.000000e+00> : vector<64x256xf32>
    %10 = tpu.matmul %8, %9, %cst_9 {dimension_numbers = #tpu.dot_dimension_numbers<[1], [0], [0], [1], [0, 0, 1, 1], [], []>} : vector<64x128xf32>, vector<128x256xf32>, vector<64x256xf32> -> vector<64x256xf32>
    %c0_10 = arith.constant 0 : index
    %c0_11 = arith.constant 0 : index
    %11 = vector.load %arg5[%c0_10, %c0_11] : memref<1x256xf32, #tpu.memory_space<vmem>>, vector<1x256xf32>
    %12 = vector.broadcast %11 : vector<1x256xf32> to vector<64x256xf32>
    %13 = arith.addf %10, %12 : vector<64x256xf32>
    %cst_12 = arith.constant 0.000000e+00 : f32
    %14 = vector.broadcast %cst_12 : f32 to vector<64x256xf32>
    %15 = arith.maximumf %13, %14 : vector<64x256xf32>
    %c0_13 = arith.constant 0 : index
    %c0_14 = arith.constant 0 : index
    %16 = vector.load %arg14[%c0_13, %c0_14] : memref<64x256xf32, #tpu.memory_space<vmem>>, vector<64x256xf32>
    tpu.vector_store %arg14[%c0_13, %c0_14], %15 {strides = array<i32>} : memref<64x256xf32, #tpu.memory_space<vmem>>, vector<64x256xf32>,
    %c0_15 = arith.constant 0 : index
    %c0_16 = arith.constant 0 : index
    %17 = vector.load %arg6[%c0_15, %c0_16] : memref<256x512xf32, #tpu.memory_space<vmem>>, vector<256x512xf32>
    %c0_17 = arith.constant 0 : index
    %c0_18 = arith.constant 0 : index
    %18 = vector.load %arg7[%c0_17, %c0_18] : memref<128x512xf32, #tpu.memory_space<vmem>>, vector<128x512xf32>
    %c0_19 = arith.constant 0 : index
    %c0_20 = arith.constant 0 : index
    %19 = vector.load %arg8[%c0_19, %c0_20] : memref<1x512xf32, #tpu.memory_space<vmem>>, vector<1x512xf32>
    %20 = vector.shape_cast %19 : vector<1x512xf32> to vector<1x512xf32>
    %21 = vector.broadcast %20 : vector<1x512xf32> to vector<8x512xf32>
    %cst_21 = arith.constant 0.000000e+00 : f32
    %22 = vector.broadcast %cst_21 : f32 to vector<8x128xf32>
    %cst_22 = arith.constant 0.000000e+00 : f32
    %23 = vector.broadcast %cst_22 : f32 to vector<8x128xf32>
    %c0_i32 = arith.constant 0 : i32
    %c8_i32 = arith.constant 8 : i32
    %24 = arith.addi %c0_i32, %c8_i32 : i32
    %c1_i32 = arith.constant 1 : i32
    %25:2 = scf.for %arg16 = %c0_i32 to %24 step %c1_i32 iter_args(%arg17 = %22, %arg18 = %23) -> (vector<8x128xf32>, vector<8x128xf32>)  : i32 {
      %c8_i32_38 = arith.constant 8 : i32
      %37 = arith.muli %arg16, %c8_i32_38 : i32
      %38 = tpu.assume_multiple %37, 8 : i32
      %39 = arith.index_cast %38 : i32 to index
      %c0_39 = arith.constant 0 : index
      %40 = vector.load %arg14[%39, %c0_39] : memref<64x256xf32, #tpu.memory_space<vmem>>, vector<8x256xf32>
      %cst_40 = arith.constant dense<0.000000e+00> : vector<8x512xf32>
      %41 = tpu.matmul %40, %17, %cst_40 {dimension_numbers = #tpu.dot_dimension_numbers<[1], [0], [0], [1], [0, 0, 1, 1], [], []>} : vector<8x256xf32>, vector<256x512xf32>, vector<8x512xf32> -> vector<8x512xf32>
      %cst_41 = arith.constant dense<0.000000e+00> : vector<8x512xf32>
      %42 = tpu.matmul %arg17, %18, %cst_41 {dimension_numbers = #tpu.dot_dimension_numbers<[1], [0], [0], [1], [0, 0, 1, 1], [], []>} : vector<8x128xf32>, vector<128x512xf32>, vector<8x512xf32> -> vector<8x512xf32>
      %43 = arith.addf %41, %42 : vector<8x512xf32>
      %44 = arith.addf %43, %21 : vector<8x512xf32>
      %45 = vector.extract_strided_slice %44 {offsets = [0, 0], sizes = [8, 128], strides = [1, 1]} : vector<8x512xf32> to vector<8x128xf32>
      %46 = arith.negf %45 : vector<8x128xf32>
      %47 = math.exp %46 : vector<8x128xf32>
      %cst_42 = arith.constant 1.000000e+00 : f32
      %48 = vector.broadcast %cst_42 : f32 to vector<8x128xf32>
      %49 = arith.addf %48, %47 : vector<8x128xf32>
      %50 = arith.divf %48, %49 : vector<8x128xf32>
      %51 = vector.extract_strided_slice %44 {offsets = [0, 128], sizes = [8, 128], strides = [1, 1]} : vector<8x512xf32> to vector<8x128xf32>
      %52 = arith.negf %51 : vector<8x128xf32>
      %53 = math.exp %52 : vector<8x128xf32>
      %cst_43 = arith.constant 1.000000e+00 : f32
      %54 = vector.broadcast %cst_43 : f32 to vector<8x128xf32>
      %55 = arith.addf %54, %53 : vector<8x128xf32>
      %56 = arith.divf %54, %55 : vector<8x128xf32>
      %57 = vector.extract_strided_slice %44 {offsets = [0, 256], sizes = [8, 128], strides = [1, 1]} : vector<8x512xf32> to vector<8x128xf32>
      %58 = math.tanh %57 : vector<8x128xf32>
      %59 = vector.extract_strided_slice %44 {offsets = [0, 384], sizes = [8, 128], strides = [1, 1]} : vector<8x512xf32> to vector<8x128xf32>
      %60 = arith.negf %59 : vector<8x128xf32>
      %61 = math.exp %60 : vector<8x128xf32>
      %cst_44 = arith.constant 1.000000e+00 : f32
      %62 = vector.broadcast %cst_44 : f32 to vector<8x128xf32>
      %63 = arith.addf %62, %61 : vector<8x128xf32>
      %64 = arith.divf %62, %63 : vector<8x128xf32>
      %65 = arith.mulf %56, %arg18 : vector<8x128xf32>
      %66 = arith.mulf %50, %58 : vector<8x128xf32>
      %67 = arith.addf %65, %66 : vector<8x128xf32>
      %68 = math.tanh %67 : vector<8x128xf32>
      %69 = arith.mulf %64, %68 : vector<8x128xf32>
      %70 = arith.index_cast %38 : i32 to index
      %c0_45 = arith.constant 0 : index
      %71 = vector.load %arg15[%70, %c0_45] : memref<64x128xf32, #tpu.memory_space<vmem>>, vector<8x128xf32>
      tpu.vector_store %arg15[%70, %c0_45], %69 {strides = array<i32>} : memref<64x128xf32, #tpu.memory_space<vmem>>, vector<8x128xf32>,
      scf.yield %69, %67 : vector<8x128xf32>, vector<8x128xf32>
    }
    %c8_i32_23 = arith.constant 8 : i32
    %c0_24 = arith.constant 0 : index
    %c0_25 = arith.constant 0 : index
    %26 = vector.load %arg12[%c0_24, %c0_25] : memref<8x128xf32, #tpu.memory_space<vmem>>, vector<8x128xf32>
    tpu.vector_store %arg12[%c0_24, %c0_25], %25#0 {strides = array<i32>} : memref<8x128xf32, #tpu.memory_space<vmem>>, vector<8x128xf32>,
    %c0_26 = arith.constant 0 : index
    %c0_27 = arith.constant 0 : index
    %27 = vector.load %arg13[%c0_26, %c0_27] : memref<8x128xf32, #tpu.memory_space<vmem>>, vector<8x128xf32>
    tpu.vector_store %arg13[%c0_26, %c0_27], %25#1 {strides = array<i32>} : memref<8x128xf32, #tpu.memory_space<vmem>>, vector<8x128xf32>,
    %c0_28 = arith.constant 0 : index
    %c0_29 = arith.constant 0 : index
    %28 = vector.load %arg15[%c0_28, %c0_29] : memref<64x128xf32, #tpu.memory_space<vmem>>, vector<64x128xf32>
    %c0_30 = arith.constant 0 : index
    %c0_31 = arith.constant 0 : index
    %29 = vector.load %arg9[%c0_30, %c0_31] : memref<128x128xf32, #tpu.memory_space<vmem>>, vector<128x128xf32>
    %cst_32 = arith.constant dense<0.000000e+00> : vector<64x128xf32>
    %30 = tpu.matmul %28, %29, %cst_32 {dimension_numbers = #tpu.dot_dimension_numbers<[1], [0], [0], [1], [0, 0, 1, 1], [], []>} : vector<64x128xf32>, vector<128x128xf32>, vector<64x128xf32> -> vector<64x128xf32>
    %c0_33 = arith.constant 0 : index
    %c0_34 = arith.constant 0 : index
    %31 = vector.load %arg10[%c0_33, %c0_34] : memref<1x128xf32, #tpu.memory_space<vmem>>, vector<1x128xf32>
    %32 = vector.broadcast %31 : vector<1x128xf32> to vector<64x128xf32>
    %33 = arith.addf %30, %32 : vector<64x128xf32>
    %c0_35 = arith.constant 0 : index
    %c0_36 = arith.constant 0 : index
    %c0_37 = arith.constant 0 : index
    %34 = vector.load %arg11[%c0_35, %c0_36, %c0_37] : memref<1x64x128xf32, #tpu.memory_space<vmem>>, vector<1x64x128xf32>
    %35 = vector.shape_cast %34 : vector<1x64x128xf32> to vector<64x128xf32>
    %36 = vector.shape_cast %33 : vector<64x128xf32> to vector<1x64x128xf32>
    tpu.vector_store %arg11[%c0_35, %c0_36, %c0_37], %36 {strides = array<i32>} : memref<1x64x128xf32, #tpu.memory_space<vmem>>, vector<1x64x128xf32>,
    return
  }
  func.func @transform_0(%arg0: i32) -> (i32, i32, i32) {
    %c0_i32 = arith.constant 0 : i32
    %c0_i32_0 = arith.constant 0 : i32
    %c0_i32_1 = arith.constant 0 : i32
    return %arg0, %c0_i32, %c0_i32_0 : i32, i32, i32
  }
  func.func @transform_1(%arg0: i32) -> (i32, i32) {
    %c0_i32 = arith.constant 0 : i32
    %c0_i32_0 = arith.constant 0 : i32
    %c0_i32_1 = arith.constant 0 : i32
    return %c0_i32, %c0_i32_0 : i32, i32
  }
  func.func @transform_2(%arg0: i32) -> (i32, i32) {
    %c0_i32 = arith.constant 0 : i32
    %c0_i32_0 = arith.constant 0 : i32
    %c0_i32_1 = arith.constant 0 : i32
    return %c0_i32, %c0_i32_0 : i32, i32
  }
  func.func @transform_3(%arg0: i32) -> (i32, i32) {
    %c0_i32 = arith.constant 0 : i32
    %c0_i32_0 = arith.constant 0 : i32
    %c0_i32_1 = arith.constant 0 : i32
    return %c0_i32, %c0_i32_0 : i32, i32
  }
  func.func @transform_4(%arg0: i32) -> (i32, i32) {
    %c0_i32 = arith.constant 0 : i32
    %c0_i32_0 = arith.constant 0 : i32
    %c0_i32_1 = arith.constant 0 : i32
    return %c0_i32, %c0_i32_0 : i32, i32
  }
  func.func @transform_5(%arg0: i32) -> (i32, i32) {
    %c0_i32 = arith.constant 0 : i32
    %c0_i32_0 = arith.constant 0 : i32
    %c0_i32_1 = arith.constant 0 : i32
    return %c0_i32, %c0_i32_0 : i32, i32
  }
  func.func @transform_6(%arg0: i32) -> (i32, i32) {
    %c0_i32 = arith.constant 0 : i32
    %c0_i32_0 = arith.constant 0 : i32
    %c0_i32_1 = arith.constant 0 : i32
    return %c0_i32, %c0_i32_0 : i32, i32
  }
  func.func @transform_7(%arg0: i32) -> (i32, i32) {
    %c0_i32 = arith.constant 0 : i32
    %c0_i32_0 = arith.constant 0 : i32
    %c0_i32_1 = arith.constant 0 : i32
    return %c0_i32, %c0_i32_0 : i32, i32
  }
  func.func @transform_8(%arg0: i32) -> (i32, i32) {
    %c0_i32 = arith.constant 0 : i32
    %c0_i32_0 = arith.constant 0 : i32
    %c0_i32_1 = arith.constant 0 : i32
    return %c0_i32, %c0_i32_0 : i32, i32
  }
  func.func @transform_9(%arg0: i32) -> (i32, i32) {
    %c0_i32 = arith.constant 0 : i32
    %c0_i32_0 = arith.constant 0 : i32
    %c0_i32_1 = arith.constant 0 : i32
    return %c0_i32, %c0_i32_0 : i32, i32
  }
  func.func @transform_10(%arg0: i32) -> (i32, i32, i32) {
    %c0_i32 = arith.constant 0 : i32
    %c0_i32_0 = arith.constant 0 : i32
    %c0_i32_1 = arith.constant 0 : i32
    return %arg0, %c0_i32, %c0_i32_0 : i32, i32, i32
  }
  func.func @transform_11(%arg0: i32) -> (i32, i32) {
    %c0_i32 = arith.constant 0 : i32
    %c0_i32_0 = arith.constant 0 : i32
    return %arg0, %c0_i32 : i32, i32
  }
  func.func @transform_12(%arg0: i32) -> (i32, i32) {
    %c0_i32 = arith.constant 0 : i32
    %c0_i32_0 = arith.constant 0 : i32
    return %arg0, %c0_i32 : i32, i32
  }
}

</mosaic_0001>

<llo_original>
// kernel: drqn_mlp_forward.1
$region0: #{drqn_mlp_forward.1}
  #allocation0 [shape = 'u32[]', space=smem, size = 0x4, offset = 0x4, fixed_abs, tag = 'smem constant byte address 0x4 - core index']
  #allocation1 [shape = 'u32[144,128]{1,0:T(1,128)}', space=vmem, size = 0x12000, scoped, tag = 'internal scratch']
  #allocation2 [shape = 'f32[64,256]{1,0:T(8,128)}', space=vmem, size = 0x10000, scoped, tag = 'scratch operand']
  #allocation3 [shape = 'f32[64,128]{1,0:T(8,128)}', space=vmem, size = 0x8000, scoped, tag = 'scratch operand']
  %s0 = inlined_call_operand.vmem [shape: f32[1,64,16], index: 0, kind: input, shape index: {}]
  %s1 = inlined_call_operand.vmem [shape: f32[16,128], index: 1, kind: input, shape index: {}]
  %s2 = inlined_call_operand.vmem [shape: f32[1,128], index: 2, kind: input, shape index: {}]
  %s3 = inlined_call_operand.hbm [shape: f32[128,256], index: 3, kind: input, shape index: {}]
  %s4 = inlined_call_operand.vmem [shape: f32[1,256], index: 4, kind: input, shape index: {}]
  %s5 = inlined_call_operand.hbm [shape: f32[256,512], index: 5, kind: input, shape index: {}]
  %s6 = inlined_call_operand.vmem [shape: f32[128,512], index: 6, kind: input, shape index: {}]
  %s7 = inlined_call_operand.vmem [shape: f32[1,512], index: 7, kind: input, shape index: {}]
  %s8 = inlined_call_operand.vmem [shape: f32[128,128], index: 8, kind: input, shape index: {}]
  %s9 = inlined_call_operand.vmem [shape: f32[1,128], index: 9, kind: input, shape index: {}]
  %s10 = inlined_call_operand.vmem [shape: f32[1,64,128], index: 10, kind: output, shape index: {0}]
  %s11 = inlined_call_operand.vmem [shape: f32[8,128], index: 11, kind: output, shape index: {1}]
  %s12 = inlined_call_operand.vmem [shape: f32[8,128], index: 12, kind: output, shape index: {2}]
  %13 = xla_tuple %s10, %s11, %s12
  %s14 = sld [smem:[#allocation0]]
  $region81: #{drqn_mlp_forward.1} parent=0
    _
  %s16 = ssub.s32 1, %s14
  %s17 = scalar_select 0, %s16, %s14
  $region1: #{drqn_mlp_forward.1} parent=0
    #allocation4 [shape = 'u8[131072]{0}', space=vmem, size = 0x20000, scoped, tag = 'input window, operand 3, single buffered']
    #allocation5 [shape = 's32[1]{0}', space=sflag, size = 0x4, scoped, tag = 'scoped memory for drqn_mlp_forward.1']
    #allocation6 [shape = 'u8[524288]{0}', space=vmem, size = 0x80000, scoped, tag = 'input window, operand 5, single buffered']
    #allocation7 [shape = 's32[1]{0}', space=sflag, size = 0x4, scoped, tag = 'scoped memory for drqn_mlp_forward.1']
    %18 = vsyncpa [#allocation5], 0
    %19 = vsyncpa [#allocation7], 0
    // Predicated region
    $region2: #{drqn_mlp_forward.1} parent=1 // pred_check
      _
    $region3: #{drqn_mlp_forward.1} parent=1 // pred_check_branch
      %21 = sbr.rel (0) target = $region5
    $region4: #{drqn_mlp_forward.1} parent=1 // pred_region
      _
    $region5: #{drqn_mlp_forward.1} parent=1 // pred_fallthru
      _
    // Predicated region
    $region6: #{drqn_mlp_forward.1} parent=1 // pred_check
      _
    $region7: #{drqn_mlp_forward.1} parent=1 // pred_check_branch
      %23 = sbr.rel (0) target = $region9
    $region8: #{drqn_mlp_forward.1} parent=1 // pred_region
      _
    $region9: #{drqn_mlp_forward.1} parent=1 // pred_fallthru
      _
    // Predicated region
    $region10: #{drqn_mlp_forward.1} parent=1 // pred_check
      _
    $region11: #{drqn_mlp_forward.1} parent=1 // pred_check_branch
      %25 = sbr.rel (0) target = $region13
    $region12: #{drqn_mlp_forward.1} parent=1 // pred_region
      _
    $region13: #{drqn_mlp_forward.1} parent=1 // pred_fallthru
      _
    // Predicated region
    $region14: #{drqn_mlp_forward.1} parent=1 // pred_check
      _
    $region15: #{drqn_mlp_forward.1} parent=1 // pred_check_branch
      %27 = sbr.rel (0) target = $region17
    $region16: #{drqn_mlp_forward.1} parent=1 // pred_region
      %s29 = ssub.s32 4096, 4096
      %30 = vsyncadd [#allocation5], %s29
      %s31 = sshll.u32 [#allocation4], 4
      %s32 = int_to_ptr.vmem [resolvable:$true] %s31
      %37 = dma.hbm_to_vmem [thread:$0]  %s3, 4096, %s32, [#allocation5], 256, 256, 16
    $region17: #{drqn_mlp_forward.1} parent=1 // pred_fallthru
      _
    // Predicated region
    $region18: #{drqn_mlp_forward.1} parent=1 // pred_check
      _
    $region19: #{drqn_mlp_forward.1} parent=1 // pred_check_branch
      %39 = sbr.rel (0) target = $region21
    $region20: #{drqn_mlp_forward.1} parent=1 // pred_region
      _
    $region21: #{drqn_mlp_forward.1} parent=1 // pred_fallthru
      _
    // Predicated region
    $region22: #{drqn_mlp_forward.1} parent=1 // pred_check
      _
    $region23: #{drqn_mlp_forward.1} parent=1 // pred_check_branch
      %41 = sbr.rel (0) target = $region25
    $region24: #{drqn_mlp_forward.1} parent=1 // pred_region
      %s43 = ssub.s32 16384, 16384
      %44 = vsyncadd [#allocation7], %s43
      %s45 = sshll.u32 [#allocation6], 4
      %s46 = int_to_ptr.vmem [resolvable:$true] %s45
      %51 = dma.hbm_to_vmem [thread:$0]  %s5, 16384, %s46, [#allocation7], 512, 512, 32
    $region25: #{drqn_mlp_forward.1} parent=1 // pred_fallthru
      _
    // Predicated region
    $region26: #{drqn_mlp_forward.1} parent=1 // pred_check
      _
    $region27: #{drqn_mlp_forward.1} parent=1 // pred_check_branch
      %53 = sbr.rel (0) target = $region29
    $region28: #{drqn_mlp_forward.1} parent=1 // pred_region
      _
    $region29: #{drqn_mlp_forward.1} parent=1 // pred_fallthru
      _
    // Predicated region
    $region30: #{drqn_mlp_forward.1} parent=1 // pred_check
      _
    $region31: #{drqn_mlp_forward.1} parent=1 // pred_check_branch
      %55 = sbr.rel (0) target = $region33
    $region32: #{drqn_mlp_forward.1} parent=1 // pred_region
      _
    $region33: #{drqn_mlp_forward.1} parent=1 // pred_fallthru
      _
    // Predicated region
    $region34: #{drqn_mlp_forward.1} parent=1 // pred_check
      _
    $region35: #{drqn_mlp_forward.1} parent=1 // pred_check_branch
      %57 = sbr.rel (0) target = $region37
    $region36: #{drqn_mlp_forward.1} parent=1 // pred_region
      _
    $region37: #{drqn_mlp_forward.1} parent=1 // pred_fallthru
      _
    // Predicated region
    $region38: #{drqn_mlp_forward.1} parent=1 // pred_check
      _
    $region39: #{drqn_mlp_forward.1} parent=1 // pred_check_branch
      %59 = sbr.rel (0) target = $region41
    $region40: #{drqn_mlp_forward.1} parent=1 // pred_region
      _
    $region41: #{drqn_mlp_forward.1} parent=1 // pred_fallthru
      _
    // Predicated region
    $region42: #{drqn_mlp_forward.1} parent=1 // pred_check
      _
    $region43: #{drqn_mlp_forward.1} parent=1 // pred_check_branch
      %61 = sbr.rel (0) target = $region45
    $region44: #{drqn_mlp_forward.1} parent=1 // pred_region
      %62 = dma.done [#allocation5], 4096
    $region45: #{drqn_mlp_forward.1} parent=1 // pred_fallthru
      _
    // Predicated region
    $region46: #{drqn_mlp_forward.1} parent=1 // pred_check
      _
    $region47: #{drqn_mlp_forward.1} parent=1 // pred_check_branch
      %64 = sbr.rel (0) target = $region49
    $region48: #{drqn_mlp_forward.1} parent=1 // pred_region
      %65 = dma.done [#allocation7], 16384
    $region49: #{drqn_mlp_forward.1} parent=1 // pred_fallthru
      _
    %v66 = vld [vmem:[%s0] sm:$0xff]
    %v67 = vld [vmem:[%s0 + $0x8] sm:$0xff]
    %v68 = vld [vmem:[%s0 + $0x10] sm:$0xff]
    %v69 = vld [vmem:[%s0 + $0x18] sm:$0xff]
    %v70 = vld [vmem:[%s0 + $0x20] sm:$0xff]
    %v71 = vld [vmem:[%s0 + $0x28] sm:$0xff]
    %v72 = vld [vmem:[%s0 + $0x30] sm:$0xff]
    %v73 = vld [vmem:[%s0 + $0x38] sm:$0xff]
    %v74 = vld [vmem:[%s1] sm:$0xff]
    %v75 = vld [vmem:[%s1 + $0x8] sm:$0xff]
    %v76 = vld [vmem:[%s2] sm:$0x1]
    %v78 = vlaneseq
    %v79 = vshrl.u32 %v78, 7
    %v80 = vsub.s32 0, %v79
    %v81 = vrot.slane %v76, %v80
    %vm83 = vcmask 130048
    %v85 = vsel %vm83, %v66, 0
    %v88 = vsel %vm83, %v67, 0
    %v91 = vsel %vm83, %v68, 0
    %v94 = vsel %vm83, %v69, 0
    %v97 = vsel %vm83, %v70, 0
    %v100 = vsel %vm83, %v71, 0
    %v103 = vsel %vm83, %v72, 0
    %v106 = vsel %vm83, %v73, 0
    %108 = vmatprep.subr.mxu0 0.0
    %109 = vmatpush1.msra.mxu0 %v74
    %110 = vmatprep.subr.mxu0 0.0
    %111 = vmatpush1.msra.mxu0 %v75
    %112 = vmatprep.subr.mxu0 0.0
    %113 = vmatpush1.msra.mxu0 0.0
    %114 = vmatprep.subr.mxu0 0.0
    %115 = vmatpush1.msra.mxu0 0.0
    %116 = vmatprep.subr.mxu0 0.0
    %117 = vmatpush1.msra.mxu0 0.0
    %118 = vmatprep.subr.mxu0 0.0
    %119 = vmatpush1.msra.mxu0 0.0
    %120 = vmatprep.subr.mxu0 0.0
    %121 = vmatpush1.msra.mxu0 0.0
    %122 = vmatprep.subr.mxu0 0.0
    %123 = vmatpush1.msra.mxu0 0.0
    %124 = vmatprep.subr.mxu0 0.0
    %125 = vmatpush1.msra.mxu0 0.0
    %126 = vmatprep.subr.mxu0 0.0
    %127 = vmatpush1.msra.mxu0 0.0
    %128 = vmatprep.subr.mxu0 0.0
    %129 = vmatpush1.msra.mxu0 0.0
    %130 = vmatprep.subr.mxu0 0.0
    %131 = vmatpush1.msra.mxu0 0.0
    %132 = vmatprep.subr.mxu0 0.0
    %133 = vmatpush1.msra.mxu0 0.0
    %134 = vmatprep.subr.mxu0 0.0
    %135 = vmatpush1.msra.mxu0 0.0
    %136 = vmatprep.subr.mxu0 0.0
    %137 = vmatpush1.msra.mxu0 0.0
    %138 = vmatprep.subr.mxu0 0.0
    %139 = vmatpush1.msra.mxu0 0.0
    %140 = vmatprep.subr.mxu0 0.0
    %141 = vmatpush1.msra.mxu0 0.0
    %142 = vmatprep.subr.mxu0 0.0
    %143 = vmatpush1.msra.mxu0 0.0
    %144 = vmatprep.subr.mxu0 0.0
    %145 = vmatpush1.msra.mxu0 0.0
    %146 = vmatprep.subr.mxu0 0.0
    %147 = vmatpush1.msra.mxu0 0.0
    %148 = vmatprep.subr.mxu0 0.0
    %149 = vmatpush1.msra.mxu0 0.0
    %150 = vmatprep.subr.mxu0 0.0
    %151 = vmatpush1.msra.mxu0 0.0
    %152 = vmatprep.subr.mxu0 0.0
    %153 = vmatpush1.msra.mxu0 0.0
    %154 = vmatprep.subr.mxu0 0.0
    %155 = vmatpush1.msra.mxu0 0.0
    %156 = vmatprep.subr.mxu0 0.0
    %157 = vmatpush1.msra.mxu0 0.0
    %158 = vmatprep.subr.mxu0 0.0
    %159 = vmatpush1.msra.mxu0 0.0
    %160 = vmatprep.subr.mxu0 0.0
    %161 = vmatpush1.msra.mxu0 0.0
    %162 = vmatprep.subr.mxu0 0.0
    %163 = vmatpush1.msra.mxu0 0.0
    %164 = vmatprep.subr.mxu0 0.0
    %165 = vmatpush1.msra.mxu0 0.0
    %166 = vmatprep.subr.mxu0 0.0
    %167 = vmatpush1.msra.mxu0 0.0
    %168 = vmatprep.subr.mxu0 0.0
    %169 = vmatpush1.msra.mxu0 0.0
    %170 = vmatprep.subr.mxu0 0.0
    %171 = vmatpush1.msra.mxu0 0.0
    %172 = vmatprep.mubr.f32.mxu0 0.0
    %173 = vmatmul.mubr.f32.gmra.mrb[0].mxu0 %v85
    %v174 = vpop.f32.mrb[0].mxu0
    %v175 = vadd.f32 %v81, %v174
    %v176 = vpop.f32.mrb[0].mxu0
    %177 = vmatprep.mubr.f32.mxu0 0.0
    %178 = vmatmul.mubr.f32.gmra.mrb[0].mxu0 %v88
    %v179 = vpop.f32.mrb[0].mxu0
    %v180 = vadd.f32 %v81, %v179
    %v181 = vpop.f32.mrb[0].mxu0
    %182 = vmatprep.mubr.f32.mxu0 0.0
    %183 = vmatmul.mubr.f32.gmra.mrb[0].mxu0 %v91
    %v184 = vpop.f32.mrb[0].mxu0
    %v185 = vadd.f32 %v81, %v184
    %v186 = vpop.f32.mrb[0].mxu0
    %187 = vmatprep.mubr.f32.mxu0 0.0
    %188 = vmatmul.mubr.f32.gmra.mrb[0].mxu0 %v94
    %v189 = vpop.f32.mrb[0].mxu0
    %v190 = vadd.f32 %v81, %v189
    %v191 = vpop.f32.mrb[0].mxu0
    %192 = vmatprep.mubr.f32.mxu0 0.0
    %193 = vmatmul.mubr.f32.gmra.mrb[0].mxu0 %v97
    %v194 = vpop.f32.mrb[0].mxu0
    %v195 = vadd.f32 %v81, %v194
    %v196 = vpop.f32.mrb[0].mxu0
    %197 = vmatprep.mubr.f32.mxu0 0.0
    %198 = vmatmul.mubr.f32.gmra.mrb[0].mxu0 %v100
    %v199 = vpop.f32.mrb[0].mxu0
    %v200 = vadd.f32 %v81, %v199
    %v201 = vpop.f32.mrb[0].mxu0
    %202 = vmatprep.mubr.f32.mxu0 0.0
    %203 = vmatmul.mubr.f32.gmra.mrb[0].mxu0 %v103
    %v204 = vpop.f32.mrb[0].mxu0
    %v205 = vadd.f32 %v81, %v204
    %v206 = vpop.f32.mrb[0].mxu0
    %207 = vmatprep.mubr.f32.mxu0 0.0
    %208 = vmatmul.mubr.f32.gmra.mrb[0].mxu0 %v106
    %v209 = vpop.f32.mrb[0].mxu0
    %v210 = vadd.f32 %v81, %v209
    %v211 = vpop.f32.mrb[0].mxu0
    %212 = vdwg.mxu0
    %v213 = vmax.f32 %v175, 0.0
    %v214 = vmax.f32 %v180, 0.0
    %v215 = vmax.f32 %v185, 0.0
    %v216 = vmax.f32 %v190, 0.0
    %v217 = vmax.f32 %v195, 0.0
    %v218 = vmax.f32 %v200, 0.0
    %v219 = vmax.f32 %v205, 0.0
    %v220 = vmax.f32 %v210, 0.0
    %v221 = vld [vmem:[#allocation4] sm:$0xff]
    %v222 = vld [vmem:[#allocation4 + $0x8] sm:$0xff]
    %v223 = vld [vmem:[#allocation4 + $0x10] sm:$0xff]
    %v224 = vld [vmem:[#allocation4 + $0x18] sm:$0xff]
    %v225 = vld [vmem:[#allocation4 + $0x20] sm:$0xff]
    %v226 = vld [vmem:[#allocation4 + $0x28] sm:$0xff]
    %v227 = vld [vmem:[#allocation4 + $0x30] sm:$0xff]
    %v228 = vld [vmem:[#allocation4 + $0x38] sm:$0xff]
    %v229 = vld [vmem:[#allocation4 + $0x40] sm:$0xff]
    %v230 = vld [vmem:[#allocation4 + $0x48] sm:$0xff]
    %v231 = vld [vmem:[#allocation4 + $0x50] sm:$0xff]
    %v232 = vld [vmem:[#allocation4 + $0x58] sm:$0xff]
    %v233 = vld [vmem:[#allocation4 + $0x60] sm:$0xff]
    %v234 = vld [vmem:[#allocation4 + $0x68] sm:$0xff]
    %v235 = vld [vmem:[#allocation4 + $0x70] sm:$0xff]
    %v236 = vld [vmem:[#allocation4 + $0x78] sm:$0xff]
    %v237 = vld [vmem:[#allocation4 + $0x80] sm:$0xff]
    %v238 = vld [vmem:[#allocation4 + $0x88] sm:$0xff]
    %v239 = vld [vmem:[#allocation4 + $0x90] sm:$0xff]
    %v240 = vld [vmem:[#allocation4 + $0x98] sm:$0xff]
    %v241 = vld [vmem:[#allocation4 + $0xa0] sm:$0xff]
    %v242 = vld [vmem:[#allocation4 + $0xa8] sm:$0xff]
    %v243 = vld [vmem:[#allocation4 + $0xb0] sm:$0xff]
    %v244 = vld [vmem:[#allocation4 + $0xb8] sm:$0xff]
    %v245 = vld [vmem:[#allocation4 + $0xc0] sm:$0xff]
    %v246 = vld [vmem:[#allocation4 + $0xc8] sm:$0xff]
    %v247 = vld [vmem:[#allocation4 + $0xd0] sm:$0xff]
    %v248 = vld [vmem:[#allocation4 + $0xd8] sm:$0xff]
    %v249 = vld [vmem:[#allocation4 + $0xe0] sm:$0xff]
    %v250 = vld [vmem:[#allocation4 + $0xe8] sm:$0xff]
    %v251 = vld [vmem:[#allocation4 + $0xf0] sm:$0xff]
    %v252 = vld [vmem:[#allocation4 + $0xf8] sm:$0xff]
    %v253 = vld [vmem:[%s4] sm:$0x3]
    %v255 = vlaneseq
    %v256 = vshrl.u32 %v255, 7
    %v257 = vsub.s32 0, %v256
    %v258 = vrot.slane %v253, %v257
    %v259 = vlaneseq
    %v260 = vshrl.u32 %v259, 7
    %v261 = vsub.s32 1, %v260
    %v262 = vrot.slane %v253, %v261
    %265 = vmatprep.subr.mxu0 %v222
    %266 = vmatpush1.msra.mxu0 %v221
    %267 = vmatprep.subr.mxu0 %v224
    %268 = vmatpush1.msra.mxu0 %v223
    %269 = vmatprep.subr.mxu0 %v226
    %270 = vmatpush1.msra.mxu0 %v225
    %271 = vmatprep.subr.mxu0 %v228
    %272 = vmatpush1.msra.mxu0 %v227
    %273 = vmatprep.subr.mxu0 %v230
    %274 = vmatpush1.msra.mxu0 %v229
    %275 = vmatprep.subr.mxu0 %v232
    %276 = vmatpush1.msra.mxu0 %v231
    %277 = vmatprep.subr.mxu0 %v234
    %278 = vmatpush1.msra.mxu0 %v233
    %279 = vmatprep.subr.mxu0 %v236
    %280 = vmatpush1.msra.mxu0 %v235
    %281 = vmatprep.subr.mxu0 %v238
    %282 = vmatpush1.msra.mxu0 %v237
    %283 = vmatprep.subr.mxu0 %v240
    %284 = vmatpush1.msra.mxu0 %v239
    %285 = vmatprep.subr.mxu0 %v242
    %286 = vmatpush1.msra.mxu0 %v241
    %287 = vmatprep.subr.mxu0 %v244
    %288 = vmatpush1.msra.mxu0 %v243
    %289 = vmatprep.subr.mxu0 %v246
    %290 = vmatpush1.msra.mxu0 %v245
    %291 = vmatprep.subr.mxu0 %v248
    %292 = vmatpush1.msra.mxu0 %v247
    %293 = vmatprep.subr.mxu0 %v250
    %294 = vmatpush1.msra.mxu0 %v249
    %295 = vmatprep.subr.mxu0 %v252
    %296 = vmatpush1.msra.mxu0 %v251
    %297 = vmatprep.subr.mxu0 0.0
    %298 = vmatpush1.msra.mxu0 0.0
    %299 = vmatprep.subr.mxu0 0.0
    %300 = vmatpush1.msra.mxu0 0.0
    %301 = vmatprep.subr.mxu0 0.0
    %302 = vmatpush1.msra.mxu0 0.0
    %303 = vmatprep.subr.mxu0 0.0
    %304 = vmatpush1.msra.mxu0 0.0
    %305 = vmatprep.subr.mxu0 0.0
    %306 = vmatpush1.msra.mxu0 0.0
    %307 = vmatprep.subr.mxu0 0.0
    %308 = vmatpush1.msra.mxu0 0.0
    %309 = vmatprep.subr.mxu0 0.0
    %310 = vmatpush1.msra.mxu0 0.0
    %311 = vmatprep.subr.mxu0 0.0
    %312 = vmatpush1.msra.mxu0 0.0
    %313 = vmatprep.subr.mxu0 0.0
    %314 = vmatpush1.msra.mxu0 0.0
    %315 = vmatprep.subr.mxu0 0.0
    %316 = vmatpush1.msra.mxu0 0.0
    %317 = vmatprep.subr.mxu0 0.0
    %318 = vmatpush1.msra.mxu0 0.0
    %319 = vmatprep.subr.mxu0 0.0
    %320 = vmatpush1.msra.mxu0 0.0
    %321 = vmatprep.subr.mxu0 0.0
    %322 = vmatpush1.msra.mxu0 0.0
    %323 = vmatprep.subr.mxu0 0.0
    %324 = vmatpush1.msra.mxu0 0.0
    %325 = vmatprep.subr.mxu0 0.0
    %326 = vmatpush1.msra.mxu0 0.0
    %327 = vmatprep.subr.mxu0 0.0
    %328 = vmatpush1.msra.mxu0 0.0
    %329 = vmatprep.mubr.f32.mxu0 0.0
    %330 = vmatmul.mubr.f32.gmra.mrb[0].mxu0 %v213
    %v331 = vpop.f32.mrb[0].mxu0
    %v332 = vadd.f32 %v258, %v331
    %v333 = vpop.f32.mrb[0].mxu0
    %v334 = vadd.f32 %v262, %v333
    %335 = vmatprep.mubr.f32.mxu0 0.0
    %336 = vmatmul.mubr.f32.gmra.mrb[0].mxu0 %v214
    %v337 = vpop.f32.mrb[0].mxu0
    %v338 = vadd.f32 %v258, %v337
    %v339 = vpop.f32.mrb[0].mxu0
    %v340 = vadd.f32 %v262, %v339
    %341 = vmatprep.mubr.f32.mxu0 0.0
    %342 = vmatmul.mubr.f32.gmra.mrb[0].mxu0 %v215
    %v343 = vpop.f32.mrb[0].mxu0
    %v344 = vadd.f32 %v258, %v343
    %v345 = vpop.f32.mrb[0].mxu0
    %v346 = vadd.f32 %v262, %v345
    %347 = vmatprep.mubr.f32.mxu0 0.0
    %348 = vmatmul.mubr.f32.gmra.mrb[0].mxu0 %v216
    %v349 = vpop.f32.mrb[0].mxu0
    %v350 = vadd.f32 %v258, %v349
    %v351 = vpop.f32.mrb[0].mxu0
    %v352 = vadd.f32 %v262, %v351
    %353 = vmatprep.mubr.f32.mxu0 0.0
    %354 = vmatmul.mubr.f32.gmra.mrb[0].mxu0 %v217
    %v355 = vpop.f32.mrb[0].mxu0
    %v356 = vadd.f32 %v258, %v355
    %v357 = vpop.f32.mrb[0].mxu0
    %v358 = vadd.f32 %v262, %v357
    %359 = vmatprep.mubr.f32.mxu0 0.0
    %360 = vmatmul.mubr.f32.gmra.mrb[0].mxu0 %v218
    %v361 = vpop.f32.mrb[0].mxu0
    %v362 = vadd.f32 %v258, %v361
    %v363 = vpop.f32.mrb[0].mxu0
    %v364 = vadd.f32 %v262, %v363
    %365 = vmatprep.mubr.f32.mxu0 0.0
    %366 = vmatmul.mubr.f32.gmra.mrb[0].mxu0 %v219
    %v367 = vpop.f32.mrb[0].mxu0
    %v368 = vadd.f32 %v258, %v367
    %v369 = vpop.f32.mrb[0].mxu0
    %v370 = vadd.f32 %v262, %v369
    %371 = vmatprep.mubr.f32.mxu0 0.0
    %372 = vmatmul.mubr.f32.gmra.mrb[0].mxu0 %v220
    %v373 = vpop.f32.mrb[0].mxu0
    %v374 = vadd.f32 %v258, %v373
    %v375 = vpop.f32.mrb[0].mxu0
    %v376 = vadd.f32 %v262, %v375
    %377 = vdwg.mxu0
    %v378 = vmax.f32 %v332, 0.0
    %v379 = vmax.f32 %v334, 0.0
    %v380 = vmax.f32 %v338, 0.0
    %v381 = vmax.f32 %v340, 0.0
    %v382 = vmax.f32 %v344, 0.0
    %v383 = vmax.f32 %v346, 0.0
    %v384 = vmax.f32 %v350, 0.0
    %v385 = vmax.f32 %v352, 0.0
    %v386 = vmax.f32 %v356, 0.0
    %v387 = vmax.f32 %v358, 0.0
    %v388 = vmax.f32 %v362, 0.0
    %v389 = vmax.f32 %v364, 0.0
    %v390 = vmax.f32 %v368, 0.0
    %v391 = vmax.f32 %v370, 0.0
    %v392 = vmax.f32 %v374, 0.0
    %v393 = vmax.f32 %v376, 0.0
    %394 = vst [vmem:[#allocation2] sm:$0xff] %v378
    %395 = vst [vmem:[#allocation2 + $0x8] sm:$0xff] %v379
    %396 = vst [vmem:[#allocation2 + $0x10] sm:$0xff] %v380
    %397 = vst [vmem:[#allocation2 + $0x18] sm:$0xff] %v381
    %398 = vst [vmem:[#allocation2 + $0x20] sm:$0xff] %v382
    %399 = vst [vmem:[#allocation2 + $0x28] sm:$0xff] %v383
    %400 = vst [vmem:[#allocation2 + $0x30] sm:$0xff] %v384
    %401 = vst [vmem:[#allocation2 + $0x38] sm:$0xff] %v385
    %402 = vst [vmem:[#allocation2 + $0x40] sm:$0xff] %v386
    %403 = vst [vmem:[#allocation2 + $0x48] sm:$0xff] %v387
    %404 = vst [vmem:[#allocation2 + $0x50] sm:$0xff] %v388
    %405 = vst [vmem:[#allocation2 + $0x58] sm:$0xff] %v389
    %406 = vst [vmem:[#allocation2 + $0x60] sm:$0xff] %v390
    %407 = vst [vmem:[#allocation2 + $0x68] sm:$0xff] %v391
    %408 = vst [vmem:[#allocation2 + $0x70] sm:$0xff] %v392
    %409 = vst [vmem:[#allocation2 + $0x78] sm:$0xff] %v393
    %v410 = vld [vmem:[#allocation6] sm:$0xff]
    %v411 = vld [vmem:[#allocation6 + $0x8] sm:$0xff]
    %v412 = vld [vmem:[#allocation6 + $0x10] sm:$0xff]
    %v413 = vld [vmem:[#allocation6 + $0x18] sm:$0xff]
    %v414 = vld [vmem:[#allocation6 + $0x20] sm:$0xff]
    %v415 = vld [vmem:[#allocation6 + $0x28] sm:$0xff]
    %v416 = vld [vmem:[#allocation6 + $0x30] sm:$0xff]
    %v417 = vld [vmem:[#allocation6 + $0x38] sm:$0xff]
    %v418 = vld [vmem:[#allocation6 + $0x40] sm:$0xff]
    %v419 = vld [vmem:[#allocation6 + $0x48] sm:$0xff]
    %v420 = vld [vmem:[#allocation6 + $0x50] sm:$0xff]
    %v421 = vld [vmem:[#allocation6 + $0x58] sm:$0xff]
    %v422 = vld [vmem:[#allocation6 + $0x60] sm:$0xff]
    %v423 = vld [vmem:[#allocation6 + $0x68] sm:$0xff]
    %v424 = vld [vmem:[#allocation6 + $0x70] sm:$0xff]
    %v425 = vld [vmem:[#allocation6 + $0x78] sm:$0xff]
    %v426 = vld [vmem:[#allocation6 + $0x80] sm:$0xff]
    %v427 = vld [vmem:[#allocation6 + $0x88] sm:$0xff]
    %v428 = vld [vmem:[#allocation6 + $0x90] sm:$0xff]
    %v429 = vld [vmem:[#allocation6 + $0x98] sm:$0xff]
    %v430 = vld [vmem:[#allocation6 + $0xa0] sm:$0xff]
    %v431 = vld [vmem:[#allocation6 + $0xa8] sm:$0xff]
    %v432 = vld [vmem:[#allocation6 + $0xb0] sm:$0xff]
    %v433 = vld [vmem:[#allocation6 + $0xb8] sm:$0xff]
    %v434 = vld [vmem:[#allocation6 + $0xc0] sm:$0xff]
    %v435 = vld [vmem:[#allocation6 + $0xc8] sm:$0xff]
    %v436 = vld [vmem:[#allocation6 + $0xd0] sm:$0xff]
    %v437 = vld [vmem:[#allocation6 + $0xd8] sm:$0xff]
    %v438 = vld [vmem:[#allocation6 + $0xe0] sm:$0xff]
    %v439 = vld [vmem:[#allocation6 + $0xe8] sm:$0xff]
    %v440 = vld [vmem:[#allocation6 + $0xf0] sm:$0xff]
    %v441 = vld [vmem:[#allocation6 + $0xf8] sm:$0xff]
    %v442 = vld [vmem:[#allocation6 + $0x100] sm:$0xff]
    %v443 = vld [vmem:[#allocation6 + $0x108] sm:$0xff]
    %v444 = vld [vmem:[#allocation6 + $0x110] sm:$0xff]
    %v445 = vld [vmem:[#allocation6 + $0x118] sm:$0xff]
    %v446 = vld [vmem:[#allocation6 + $0x120] sm:$0xff]
    %v447 = vld [vmem:[#allocation6 + $0x128] sm:$0xff]
    %v448 = vld [vmem:[#allocation6 + $0x130] sm:$0xff]
    %v449 = vld [vmem:[#allocation6 + $0x138] sm:$0xff]
    %v450 = vld [vmem:[#allocation6 + $0x140] sm:$0xff]
    %v451 = vld [vmem:[#allocation6 + $0x148] sm:$0xff]
    %v452 = vld [vmem:[#allocation6 + $0x150] sm:$0xff]
    %v453 = vld [vmem:[#allocation6 + $0x158] sm:$0xff]
    %v454 = vld [vmem:[#allocation6 + $0x160] sm:$0xff]
    %v455 = vld [vmem:[#allocation6 + $0x168] sm:$0xff]
    %v456 = vld [vmem:[#allocation6 + $0x170] sm:$0xff]
    %v457 = vld [vmem:[#allocation6 + $0x178] sm:$0xff]
    %v458 = vld [vmem:[#allocation6 + $0x180] sm:$0xff]
    %v459 = vld [vmem:[#allocation6 + $0x188] sm:$0xff]
    %v460 = vld [vmem:[#allocation6 + $0x190] sm:$0xff]
    %v461 = vld [vmem:[#allocation6 + $0x198] sm:$0xff]
    %v462 = vld [vmem:[#allocation6 + $0x1a0] sm:$0xff]
    %v463 = vld [vmem:[#allocation6 + $0x1a8] sm:$0xff]
    %v464 = vld [vmem:[#allocation6 + $0x1b0] sm:$0xff]
    %v465 = vld [vmem:[#allocation6 + $0x1b8] sm:$0xff]
    %v466 = vld [vmem:[#allocation6 + $0x1c0] sm:$0xff]
    %v467 = vld [vmem:[#allocation6 + $0x1c8] sm:$0xff]
    %v468 = vld [vmem:[#allocation6 + $0x1d0] sm:$0xff]
    %v469 = vld [vmem:[#allocation6 + $0x1d8] sm:$0xff]
    %v470 = vld [vmem:[#allocation6 + $0x1e0] sm:$0xff]
    %v471 = vld [vmem:[#allocation6 + $0x1e8] sm:$0xff]
    %v472 = vld [vmem:[#allocation6 + $0x1f0] sm:$0xff]
    %v473 = vld [vmem:[#allocation6 + $0x1f8] sm:$0xff]
    %v474 = vld [vmem:[#allocation6 + $0x200] sm:$0xff]
    %v475 = vld [vmem:[#allocation6 + $0x208] sm:$0xff]
    %v476 = vld [vmem:[#allocation6 + $0x210] sm:$0xff]
    %v477 = vld [vmem:[#allocation6 + $0x218] sm:$0xff]
    %v478 = vld [vmem:[#allocation6 + $0x220] sm:$0xff]
    %v479 = vld [vmem:[#allocation6 + $0x228] sm:$0xff]
    %v480 = vld [vmem:[#allocation6 + $0x230] sm:$0xff]
    %v481 = vld [vmem:[#allocation6 + $0x238] sm:$0xff]
    %v482 = vld [vmem:[#allocation6 + $0x240] sm:$0xff]
    %v483 = vld [vmem:[#allocation6 + $0x248] sm:$0xff]
    %v484 = vld [vmem:[#allocation6 + $0x250] sm:$0xff]
    %v485 = vld [vmem:[#allocation6 + $0x258] sm:$0xff]
    %v486 = vld [vmem:[#allocation6 + $0x260] sm:$0xff]
    %v487 = vld [vmem:[#allocation6 + $0x268] sm:$0xff]
    %v488 = vld [vmem:[#allocation6 + $0x270] sm:$0xff]
    %v489 = vld [vmem:[#allocation6 + $0x278] sm:$0xff]
    %v490 = vld [vmem:[#allocation6 + $0x280] sm:$0xff]
    %v491 = vld [vmem:[#allocation6 + $0x288] sm:$0xff]
    %v492 = vld [vmem:[#allocation6 + $0x290] sm:$0xff]
    %v493 = vld [vmem:[#allocation6 + $0x298] sm:$0xff]
    %v494 = vld [vmem:[#allocation6 + $0x2a0] sm:$0xff]
    %v495 = vld [vmem:[#allocation6 + $0x2a8] sm:$0xff]
    %v496 = vld [vmem:[#allocation6 + $0x2b0] sm:$0xff]
    %v497 = vld [vmem:[#allocation6 + $0x2b8] sm:$0xff]
    %v498 = vld [vmem:[#allocation6 + $0x2c0] sm:$0xff]
    %v499 = vld [vmem:[#allocation6 + $0x2c8] sm:$0xff]
    %v500 = vld [vmem:[#allocation6 + $0x2d0] sm:$0xff]
    %v501 = vld [vmem:[#allocation6 + $0x2d8] sm:$0xff]
    %v502 = vld [vmem:[#allocation6 + $0x2e0] sm:$0xff]
    %v503 = vld [vmem:[#allocation6 + $0x2e8] sm:$0xff]
    %v504 = vld [vmem:[#allocation6 + $0x2f0] sm:$0xff]
    %v505 = vld [vmem:[#allocation6 + $0x2f8] sm:$0xff]
    %v506 = vld [vmem:[#allocation6 + $0x300] sm:$0xff]
    %v507 = vld [vmem:[#allocation6 + $0x308] sm:$0xff]
    %v508 = vld [vmem:[#allocation6 + $0x310] sm:$0xff]
    %v509 = vld [vmem:[#allocation6 + $0x318] sm:$0xff]
    %v510 = vld [vmem:[#allocation6 + $0x320] sm:$0xff]
    %v511 = vld [vmem:[#allocation6 + $0x328] sm:$0xff]
    %v512 = vld [vmem:[#allocation6 + $0x330] sm:$0xff]
    %v513 = vld [vmem:[#allocation6 + $0x338] sm:$0xff]
    %v514 = vld [vmem:[#allocation6 + $0x340] sm:$0xff]
    %v515 = vld [vmem:[#allocation6 + $0x348] sm:$0xff]
    %v516 = vld [vmem:[#allocation6 + $0x350] sm:$0xff]
    %v517 = vld [vmem:[#allocation6 + $0x358] sm:$0xff]
    %v518 = vld [vmem:[#allocation6 + $0x360] sm:$0xff]
    %v519 = vld [vmem:[#allocation6 + $0x368] sm:$0xff]
    %v520 = vld [vmem:[#allocation6 + $0x370] sm:$0xff]
    %v521 = vld [vmem:[#allocation6 + $0x378] sm:$0xff]
    %v522 = vld [vmem:[#allocation6 + $0x380] sm:$0xff]
    %v523 = vld [vmem:[#allocation6 + $0x388] sm:$0xff]
    %v524 = vld [vmem:[#allocation6 + $0x390] sm:$0xff]
    %v525 = vld [vmem:[#allocation6 + $0x398] sm:$0xff]
    %v526 = vld [vmem:[#allocation6 + $0x3a0] sm:$0xff]
    %v527 = vld [vmem:[#allocation6 + $0x3a8] sm:$0xff]
    %v528 = vld [vmem:[#allocation6 + $0x3b0] sm:$0xff]
    %v529 = vld [vmem:[#allocation6 + $0x3b8] sm:$0xff]
    %v530 = vld [vmem:[#allocation6 + $0x3c0] sm:$0xff]
    %v531 = vld [vmem:[#allocation6 + $0x3c8] sm:$0xff]
    %v532 = vld [vmem:[#allocation6 + $0x3d0] sm:$0xff]
    %v533 = vld [vmem:[#allocation6 + $0x3d8] sm:$0xff]
    %v534 = vld [vmem:[#allocation6 + $0x3e0] sm:$0xff]
    %v535 = vld [vmem:[#allocation6 + $0x3e8] sm:$0xff]
    %v536 = vld [vmem:[#allocation6 + $0x3f0] sm:$0xff]
    %v537 = vld [vmem:[#allocation6 + $0x3f8] sm:$0xff]
    %v538 = vld [vmem:[%s6] sm:$0xff]
    %v539 = vld [vmem:[%s6 + $0x8] sm:$0xff]
    %v540 = vld [vmem:[%s6 + $0x10] sm:$0xff]
    %v541 = vld [vmem:[%s6 + $0x18] sm:$0xff]
    %v542 = vld [vmem:[%s6 + $0x20] sm:$0xff]
    %v543 = vld [vmem:[%s6 + $0x28] sm:$0xff]
    %v544 = vld [vmem:[%s6 + $0x30] sm:$0xff]
    %v545 = vld [vmem:[%s6 + $0x38] sm:$0xff]
    %v546 = vld [vmem:[%s6 + $0x40] sm:$0xff]
    %v547 = vld [vmem:[%s6 + $0x48] sm:$0xff]
    %v548 = vld [vmem:[%s6 + $0x50] sm:$0xff]
    %v549 = vld [vmem:[%s6 + $0x58] sm:$0xff]
    %v550 = vld [vmem:[%s6 + $0x60] sm:$0xff]
    %v551 = vld [vmem:[%s6 + $0x68] sm:$0xff]
    %v552 = vld [vmem:[%s6 + $0x70] sm:$0xff]
    %v553 = vld [vmem:[%s6 + $0x78] sm:$0xff]
    %v554 = vld [vmem:[%s6 + $0x80] sm:$0xff]
    %v555 = vld [vmem:[%s6 + $0x88] sm:$0xff]
    %v556 = vld [vmem:[%s6 + $0x90] sm:$0xff]
    %v557 = vld [vmem:[%s6 + $0x98] sm:$0xff]
    %v558 = vld [vmem:[%s6 + $0xa0] sm:$0xff]
    %v559 = vld [vmem:[%s6 + $0xa8] sm:$0xff]
    %v560 = vld [vmem:[%s6 + $0xb0] sm:$0xff]
    %v561 = vld [vmem:[%s6 + $0xb8] sm:$0xff]
    %v562 = vld [vmem:[%s6 + $0xc0] sm:$0xff]
    %v563 = vld [vmem:[%s6 + $0xc8] sm:$0xff]
    %v564 = vld [vmem:[%s6 + $0xd0] sm:$0xff]
    %v565 = vld [vmem:[%s6 + $0xd8] sm:$0xff]
    %v566 = vld [vmem:[%s6 + $0xe0] sm:$0xff]
    %v567 = vld [vmem:[%s6 + $0xe8] sm:$0xff]
    %v568 = vld [vmem:[%s6 + $0xf0] sm:$0xff]
    %v569 = vld [vmem:[%s6 + $0xf8] sm:$0xff]
    %v570 = vld [vmem:[%s6 + $0x100] sm:$0xff]
    %v571 = vld [vmem:[%s6 + $0x108] sm:$0xff]
    %v572 = vld [vmem:[%s6 + $0x110] sm:$0xff]
    %v573 = vld [vmem:[%s6 + $0x118] sm:$0xff]
    %v574 = vld [vmem:[%s6 + $0x120] sm:$0xff]
    %v575 = vld [vmem:[%s6 + $0x128] sm:$0xff]
    %v576 = vld [vmem:[%s6 + $0x130] sm:$0xff]
    %v577 = vld [vmem:[%s6 + $0x138] sm:$0xff]
    %v578 = vld [vmem:[%s6 + $0x140] sm:$0xff]
    %v579 = vld [vmem:[%s6 + $0x148] sm:$0xff]
    %v580 = vld [vmem:[%s6 + $0x150] sm:$0xff]
    %v581 = vld [vmem:[%s6 + $0x158] sm:$0xff]
    %v582 = vld [vmem:[%s6 + $0x160] sm:$0xff]
    %v583 = vld [vmem:[%s6 + $0x168] sm:$0xff]
    %v584 = vld [vmem:[%s6 + $0x170] sm:$0xff]
    %v585 = vld [vmem:[%s6 + $0x178] sm:$0xff]
    %v586 = vld [vmem:[%s6 + $0x180] sm:$0xff]
    %v587 = vld [vmem:[%s6 + $0x188] sm:$0xff]
    %v588 = vld [vmem:[%s6 + $0x190] sm:$0xff]
    %v589 = vld [vmem:[%s6 + $0x198] sm:$0xff]
    %v590 = vld [vmem:[%s6 + $0x1a0] sm:$0xff]
    %v591 = vld [vmem:[%s6 + $0x1a8] sm:$0xff]
    %v592 = vld [vmem:[%s6 + $0x1b0] sm:$0xff]
    %v593 = vld [vmem:[%s6 + $0x1b8] sm:$0xff]
    %v594 = vld [vmem:[%s6 + $0x1c0] sm:$0xff]
    %v595 = vld [vmem:[%s6 + $0x1c8] sm:$0xff]
    %v596 = vld [vmem:[%s6 + $0x1d0] sm:$0xff]
    %v597 = vld [vmem:[%s6 + $0x1d8] sm:$0xff]
    %v598 = vld [vmem:[%s6 + $0x1e0] sm:$0xff]
    %v599 = vld [vmem:[%s6 + $0x1e8] sm:$0xff]
    %v600 = vld [vmem:[%s6 + $0x1f0] sm:$0xff]
    %v601 = vld [vmem:[%s6 + $0x1f8] sm:$0xff]
    %v602 = vld [vmem:[%s7] sm:$0xf]
    %v604 = vlaneseq
    %v605 = vshrl.u32 %v604, 7
    %v606 = vsub.s32 0, %v605
    %v607 = vrot.slane %v602, %v606
    %v608 = vlaneseq
    %v609 = vshrl.u32 %v608, 7
    %v610 = vsub.s32 1, %v609
    %v611 = vrot.slane %v602, %v610
    %v612 = vlaneseq
    %v613 = vshrl.u32 %v612, 7
    %v614 = vsub.s32 2, %v613
    %v615 = vrot.slane %v602, %v614
    %v616 = vlaneseq
    %v617 = vshrl.u32 %v616, 7
    %v618 = vsub.s32 3, %v617
    %v619 = vrot.slane %v602, %v618
    loop: start=0, step=1, limit=8
    $region50: #{drqn_mlp_forward.1} parent=1 // loop_pre_header
      _
    $region51: #{drqn_mlp_forward.1} parent=1 // loop_header
      %s625 = sphi 0, %s629
      %p626 = scmp.ge.s32.totalorder %s625, 8
      %v630 = vphi 0.0, %v951
      %v631 = vphi 0.0, %v949
    $region52: #{drqn_mlp_forward.1} parent=1 // loop_header_branch
      %628 = sbr.rel (%p626) target = $region56
    $region53: #{drqn_mlp_forward.1} parent=1 // loop_body
      %s632 = smul.u32 %s625, 8
      %s633 = sshra.s32 %s632, 3
      %s634 = sand.u32 %s632, 7
      %s635 = smul.u32 %s633, 2
      %s636 = smul.addr %s635, 8
      %s637 = scalar_lea.vmem [#allocation2], %s636
      %v638 = vld [vmem:[%s637] sm:$0xff]
      %v639 = vld [vmem:[%s637 + $0x8] sm:$0xff]
      %640 = vmatprep.subr.mxu0 %v539
      %641 = vmatpush1.msra.mxu0 %v538
      %642 = vmatprep.subr.mxu0 %v543
      %643 = vmatpush1.msra.mxu0 %v542
      %644 = vmatprep.subr.mxu0 %v547
      %645 = vmatpush1.msra.mxu0 %v546
      %646 = vmatprep.subr.mxu0 %v551
      %647 = vmatpush1.msra.mxu0 %v550
      %648 = vmatprep.subr.mxu0 %v555
      %649 = vmatpush1.msra.mxu0 %v554
      %650 = vmatprep.subr.mxu0 %v559
      %651 = vmatpush1.msra.mxu0 %v558
      %652 = vmatprep.subr.mxu0 %v563
      %653 = vmatpush1.msra.mxu0 %v562
      %654 = vmatprep.subr.mxu0 %v567
      %655 = vmatpush1.msra.mxu0 %v566
      %656 = vmatprep.subr.mxu0 %v571
      %657 = vmatpush1.msra.mxu0 %v570
      %658 = vmatprep.subr.mxu0 %v575
      %659 = vmatpush1.msra.mxu0 %v574
      %660 = vmatprep.subr.mxu0 %v579
      %661 = vmatpush1.msra.mxu0 %v578
      %662 = vmatprep.subr.mxu0 %v583
      %663 = vmatpush1.msra.mxu0 %v582
      %664 = vmatprep.subr.mxu0 %v587
      %665 = vmatpush1.msra.mxu0 %v586
      %666 = vmatprep.subr.mxu0 %v591
      %667 = vmatpush1.msra.mxu0 %v590
      %668 = vmatprep.subr.mxu0 %v595
      %669 = vmatpush1.msra.mxu0 %v594
      %670 = vmatprep.subr.mxu0 %v599
      %671 = vmatpush1.msra.mxu0 %v598
      %672 = vmatprep.subr.mxu0 0.0
      %673 = vmatpush1.msra.mxu0 0.0
      %674 = vmatprep.subr.mxu0 0.0
      %675 = vmatpush1.msra.mxu0 0.0
      %676 = vmatprep.subr.mxu0 0.0
      %677 = vmatpush1.msra.mxu0 0.0
      %678 = vmatprep.subr.mxu0 0.0
      %679 = vmatpush1.msra.mxu0 0.0
      %680 = vmatprep.subr.mxu0 0.0
      %681 = vmatpush1.msra.mxu0 0.0
      %682 = vmatprep.subr.mxu0 0.0
      %683 = vmatpush1.msra.mxu0 0.0
      %684 = vmatprep.subr.mxu0 0.0
      %685 = vmatpush1.msra.mxu0 0.0
      %686 = vmatprep.subr.mxu0 0.0
      %687 = vmatpush1.msra.mxu0 0.0
      %688 = vmatprep.subr.mxu0 0.0
      %689 = vmatpush1.msra.mxu0 0.0
      %690 = vmatprep.subr.mxu0 0.0
      %691 = vmatpush1.msra.mxu0 0.0
      %692 = vmatprep.subr.mxu0 0.0
      %693 = vmatpush1.msra.mxu0 0.0
      %694 = vmatprep.subr.mxu0 0.0
      %695 = vmatpush1.msra.mxu0 0.0
      %696 = vmatprep.subr.mxu0 0.0
      %697 = vmatpush1.msra.mxu0 0.0
      %698 = vmatprep.subr.mxu0 0.0
      %699 = vmatpush1.msra.mxu0 0.0
      %700 = vmatprep.subr.mxu0 0.0
      %701 = vmatpush1.msra.mxu0 0.0
      %702 = vmatprep.subr.mxu0 0.0
      %703 = vmatpush1.msra.mxu0 0.0
      %704 = vmatprep.mubr.f32.mxu0 0.0
      %705 = vmatmul.mubr.f32.gmra.mrb[0].mxu0 %v630
      %v706 = vpop.f32.mrb[0].mxu0
      %v707 = vadd.f32 0.0, %v706
      %v708 = vpop.f32.mrb[0].mxu0
      %v709 = vadd.f32 0.0, %v708
      %710 = vdwg.mxu0
      %711 = vmatprep.subr.mxu0 %v541
      %712 = vmatpush1.msra.mxu0 %v540
      %713 = vmatprep.subr.mxu0 %v545
      %714 = vmatpush1.msra.mxu0 %v544
      %715 = vmatprep.subr.mxu0 %v549
      %716 = vmatpush1.msra.mxu0 %v548
      %717 = vmatprep.subr.mxu0 %v553
      %718 = vmatpush1.msra.mxu0 %v552
      %719 = vmatprep.subr.mxu0 %v557
      %720 = vmatpush1.msra.mxu0 %v556
      %721 = vmatprep.subr.mxu0 %v561
      %722 = vmatpush1.msra.mxu0 %v560
      %723 = vmatprep.subr.mxu0 %v565
      %724 = vmatpush1.msra.mxu0 %v564
      %725 = vmatprep.subr.mxu0 %v569
      %726 = vmatpush1.msra.mxu0 %v568
      %727 = vmatprep.subr.mxu0 %v573
      %728 = vmatpush1.msra.mxu0 %v572
      %729 = vmatprep.subr.mxu0 %v577
      %730 = vmatpush1.msra.mxu0 %v576
      %731 = vmatprep.subr.mxu0 %v581
      %732 = vmatpush1.msra.mxu0 %v580
      %733 = vmatprep.subr.mxu0 %v585
      %734 = vmatpush1.msra.mxu0 %v584
      %735 = vmatprep.subr.mxu0 %v589
      %736 = vmatpush1.msra.mxu0 %v588
      %737 = vmatprep.subr.mxu0 %v593
      %738 = vmatpush1.msra.mxu0 %v592
      %739 = vmatprep.subr.mxu0 %v597
      %740 = vmatpush1.msra.mxu0 %v596
      %741 = vmatprep.subr.mxu0 %v601
      %742 = vmatpush1.msra.mxu0 %v600
      %743 = vmatprep.subr.mxu0 0.0
      %744 = vmatpush1.msra.mxu0 0.0
      %745 = vmatprep.subr.mxu0 0.0
      %746 = vmatpush1.msra.mxu0 0.0
      %747 = vmatprep.subr.mxu0 0.0
      %748 = vmatpush1.msra.mxu0 0.0
      %749 = vmatprep.subr.mxu0 0.0
      %750 = vmatpush1.msra.mxu0 0.0
      %751 = vmatprep.subr.mxu0 0.0
      %752 = vmatpush1.msra.mxu0 0.0
      %753 = vmatprep.subr.mxu0 0.0
      %754 = vmatpush1.msra.mxu0 0.0
      %755 = vmatprep.subr.mxu0 0.0
      %756 = vmatpush1.msra.mxu0 0.0
      %757 = vmatprep.subr.mxu0 0.0
      %758 = vmatpush1.msra.mxu0 0.0
      %759 = vmatprep.subr.mxu0 0.0
      %760 = vmatpush1.msra.mxu0 0.0
      %761 = vmatprep.subr.mxu0 0.0
      %762 = vmatpush1.msra.mxu0 0.0
      %763 = vmatprep.subr.mxu0 0.0
      %764 = vmatpush1.msra.mxu0 0.0
      %765 = vmatprep.subr.mxu0 0.0
      %766 = vmatpush1.msra.mxu0 0.0
      %767 = vmatprep.subr.mxu0 0.0
      %768 = vmatpush1.msra.mxu0 0.0
      %769 = vmatprep.subr.mxu0 0.0
      %770 = vmatpush1.msra.mxu0 0.0
      %771 = vmatprep.subr.mxu0 0.0
      %772 = vmatpush1.msra.mxu0 0.0
      %773 = vmatprep.subr.mxu0 0.0
      %774 = vmatpush1.msra.mxu0 0.0
      %775 = vmatprep.mubr.f32.mxu0 0.0
      %776 = vmatmul.mubr.f32.gmra.mrb[0].mxu0 %v630
      %v777 = vpop.f32.mrb[0].mxu0
      %v778 = vadd.f32 0.0, %v777
      %v779 = vpop.f32.mrb[0].mxu0
      %v780 = vadd.f32 0.0, %v779
      %781 = vdwg.mxu0
      %782 = vmatprep.subr.mxu0 %v411
      %783 = vmatpush1.msra.mxu0 %v410
      %784 = vmatprep.subr.mxu0 %v415
      %785 = vmatpush1.msra.mxu0 %v414
      %786 = vmatprep.subr.mxu0 %v419
      %787 = vmatpush1.msra.mxu0 %v418
      %788 = vmatprep.subr.mxu0 %v423
      %789 = vmatpush1.msra.mxu0 %v422
      %790 = vmatprep.subr.mxu0 %v427
      %791 = vmatpush1.msra.mxu0 %v426
      %792 = vmatprep.subr.mxu0 %v431
      %793 = vmatpush1.msra.mxu0 %v430
      %794 = vmatprep.subr.mxu0 %v435
      %795 = vmatpush1.msra.mxu0 %v434
      %796 = vmatprep.subr.mxu0 %v439
      %797 = vmatpush1.msra.mxu0 %v438
      %798 = vmatprep.subr.mxu0 %v443
      %799 = vmatpush1.msra.mxu0 %v442
      %800 = vmatprep.subr.mxu0 %v447
      %801 = vmatpush1.msra.mxu0 %v446
      %802 = vmatprep.subr.mxu0 %v451
      %803 = vmatpush1.msra.mxu0 %v450
      %804 = vmatprep.subr.mxu0 %v455
      %805 = vmatpush1.msra.mxu0 %v454
      %806 = vmatprep.subr.mxu0 %v459
      %807 = vmatpush1.msra.mxu0 %v458
      %808 = vmatprep.subr.mxu0 %v463
      %809 = vmatpush1.msra.mxu0 %v462
      %810 = vmatprep.subr.mxu0 %v467
      %811 = vmatpush1.msra.mxu0 %v466
      %812 = vmatprep.subr.mxu0 %v471
      %813 = vmatpush1.msra.mxu0 %v470
      %814 = vmatprep.subr.mxu0 %v475
      %815 = vmatpush1.msra.mxu0 %v474
      %816 = vmatprep.subr.mxu0 %v479
      %817 = vmatpush1.msra.mxu0 %v478
      %818 = vmatprep.subr.mxu0 %v483
      %819 = vmatpush1.msra.mxu0 %v482
      %820 = vmatprep.subr.mxu0 %v487
      %821 = vmatpush1.msra.mxu0 %v486
      %822 = vmatprep.subr.mxu0 %v491
      %823 = vmatpush1.msra.mxu0 %v490
      %824 = vmatprep.subr.mxu0 %v495
      %825 = vmatpush1.msra.mxu0 %v494
      %826 = vmatprep.subr.mxu0 %v499
      %827 = vmatpush1.msra.mxu0 %v498
      %828 = vmatprep.subr.mxu0 %v503
      %829 = vmatpush1.msra.mxu0 %v502
      %830 = vmatprep.subr.mxu0 %v507
      %831 = vmatpush1.msra.mxu0 %v506
      %832 = vmatprep.subr.mxu0 %v511
      %833 = vmatpush1.msra.mxu0 %v510
      %834 = vmatprep.subr.mxu0 %v515
      %835 = vmatpush1.msra.mxu0 %v514
      %836 = vmatprep.subr.mxu0 %v519
      %837 = vmatpush1.msra.mxu0 %v518
      %838 = vmatprep.subr.mxu0 %v523
      %839 = vmatpush1.msra.mxu0 %v522
      %840 = vmatprep.subr.mxu0 %v527
      %841 = vmatpush1.msra.mxu0 %v526
      %842 = vmatprep.subr.mxu0 %v531
      %843 = vmatpush1.msra.mxu0 %v530
      %844 = vmatprep.subr.mxu0 %v535
      %845 = vmatpush1.msra.mxu0 %v534
      %846 = vmatprep.mubr.f32.mxu0 %v639
      %847 = vmatmul.mubr.f32.gmra.mrb[0].mxu0 %v638
      %v848 = vpop.f32.mrb[0].mxu0
      %v849 = vadd.f32 %v707, %v848
      %v850 = vpop.f32.mrb[0].mxu0
      %v851 = vadd.f32 %v709, %v850
      %852 = vdwg.mxu0
      %853 = vmatprep.subr.mxu0 %v413
      %854 = vmatpush1.msra.mxu0 %v412
      %855 = vmatprep.subr.mxu0 %v417
      %856 = vmatpush1.msra.mxu0 %v416
      %857 = vmatprep.subr.mxu0 %v421
      %858 = vmatpush1.msra.mxu0 %v420
      %859 = vmatprep.subr.mxu0 %v425
      %860 = vmatpush1.msra.mxu0 %v424
      %861 = vmatprep.subr.mxu0 %v429
      %862 = vmatpush1.msra.mxu0 %v428
      %863 = vmatprep.subr.mxu0 %v433
      %864 = vmatpush1.msra.mxu0 %v432
      %865 = vmatprep.subr.mxu0 %v437
      %866 = vmatpush1.msra.mxu0 %v436
      %867 = vmatprep.subr.mxu0 %v441
      %868 = vmatpush1.msra.mxu0 %v440
      %869 = vmatprep.subr.mxu0 %v445
      %870 = vmatpush1.msra.mxu0 %v444
      %871 = vmatprep.subr.mxu0 %v449
      %872 = vmatpush1.msra.mxu0 %v448
      %873 = vmatprep.subr.mxu0 %v453
      %874 = vmatpush1.msra.mxu0 %v452
      %875 = vmatprep.subr.mxu0 %v457
      %876 = vmatpush1.msra.mxu0 %v456
      %877 = vmatprep.subr.mxu0 %v461
      %878 = vmatpush1.msra.mxu0 %v460
      %879 = vmatprep.subr.mxu0 %v465
      %880 = vmatpush1.msra.mxu0 %v464
      %881 = vmatprep.subr.mxu0 %v469
      %882 = vmatpush1.msra.mxu0 %v468
      %883 = vmatprep.subr.mxu0 %v473
      %884 = vmatpush1.msra.mxu0 %v472
      %885 = vmatprep.subr.mxu0 %v477
      %886 = vmatpush1.msra.mxu0 %v476
      %887 = vmatprep.subr.mxu0 %v481
      %888 = vmatpush1.msra.mxu0 %v480
      %889 = vmatprep.subr.mxu0 %v485
      %890 = vmatpush1.msra.mxu0 %v484
      %891 = vmatprep.subr.mxu0 %v489
      %892 = vmatpush1.msra.mxu0 %v488
      %893 = vmatprep.subr.mxu0 %v493
      %894 = vmatpush1.msra.mxu0 %v492
      %895 = vmatprep.subr.mxu0 %v497
      %896 = vmatpush1.msra.mxu0 %v496
      %897 = vmatprep.subr.mxu0 %v501
      %898 = vmatpush1.msra.mxu0 %v500
      %899 = vmatprep.subr.mxu0 %v505
      %900 = vmatpush1.msra.mxu0 %v504
      %901 = vmatprep.subr.mxu0 %v509
      %902 = vmatpush1.msra.mxu0 %v508
      %903 = vmatprep.subr.mxu0 %v513
      %904 = vmatpush1.msra.mxu0 %v512
      %905 = vmatprep.subr.mxu0 %v517
      %906 = vmatpush1.msra.mxu0 %v516
      %907 = vmatprep.subr.mxu0 %v521
      %908 = vmatpush1.msra.mxu0 %v520
      %909 = vmatprep.subr.mxu0 %v525
      %910 = vmatpush1.msra.mxu0 %v524
      %911 = vmatprep.subr.mxu0 %v529
      %912 = vmatpush1.msra.mxu0 %v528
      %913 = vmatprep.subr.mxu0 %v533
      %914 = vmatpush1.msra.mxu0 %v532
      %915 = vmatprep.subr.mxu0 %v537
      %916 = vmatpush1.msra.mxu0 %v536
      %917 = vmatprep.mubr.f32.mxu0 %v639
      %918 = vmatmul.mubr.f32.gmra.mrb[0].mxu0 %v638
      %v919 = vpop.f32.mrb[0].mxu0
      %v920 = vadd.f32 %v778, %v919
      %v921 = vpop.f32.mrb[0].mxu0
      %v922 = vadd.f32 %v780, %v921
      %923 = vdwg.mxu0
      %v924 = vadd.f32 %v849, %v607
      %v925 = vadd.f32 %v851, %v611
      %v926 = vadd.f32 %v920, %v615
      %v927 = vadd.f32 %v922, %v619
      %v928 = vxor.u32 %v924, 2147483648
      %v929 = vmul.f32 %v928, 1.442695
      %v930 = vpow.pop %v929
      %v931 = vadd.f32 %v930, 1.0
      %v932 = vrcp.pop %v931
      %v933 = vmul.f32 1.0, %v932
      %v934 = vxor.u32 %v925, 2147483648
      %v935 = vmul.f32 %v934, 1.442695
      %v936 = vpow.pop %v935
      %v937 = vadd.f32 %v936, 1.0
      %v938 = vrcp.pop %v937
      %v939 = vmul.f32 1.0, %v938
      %v940 = vtanh.pop %v926
      %v941 = vxor.u32 %v927, 2147483648
      %v942 = vmul.f32 %v941, 1.442695
      %v943 = vpow.pop %v942
      %v944 = vadd.f32 %v943, 1.0
      %v945 = vrcp.pop %v944
      %v946 = vmul.f32 1.0, %v945
      %v947 = vmul.f32 %v939, %v631
      %v948 = vmul.f32 %v933, %v940
      %v949 = vadd.f32 %v947, %v948
      %v950 = vtanh.pop %v949
      %v951 = vmul.f32 %v946, %v950
      %s952 = scalar_lea.vmem [#allocation3], %s632
      %953 = vst [vmem:[%s952] sm:$0xff] %v951
    $region54: #{drqn_mlp_forward.1} parent=1 // loop_footer
      %s629 = sadd.s32 1, %s625
    $region55: #{drqn_mlp_forward.1} parent=1 // loop_footer_branch
      %624 = sbr.rel target = $region51
    $region56: #{drqn_mlp_forward.1} parent=1 // loop_exit
      _
    %954 = vst [vmem:[%s11] sm:$0xff] %v630
    %955 = vst [vmem:[%s12] sm:$0xff] %v631
    %v956 = vld [vmem:[#allocation3] sm:$0xff]
    %v957 = vld [vmem:[#allocation3 + $0x8] sm:$0xff]
    %v958 = vld [vmem:[#allocation3 + $0x10] sm:$0xff]
    %v959 = vld [vmem:[#allocation3 + $0x18] sm:$0xff]
    %v960 = vld [vmem:[#allocation3 + $0x20] sm:$0xff]
    %v961 = vld [vmem:[#allocation3 + $0x28] sm:$0xff]
    %v962 = vld [vmem:[#allocation3 + $0x30] sm:$0xff]
    %v963 = vld [vmem:[#allocation3 + $0x38] sm:$0xff]
    %v964 = vld [vmem:[%s8] sm:$0xff]
    %v965 = vld [vmem:[%s8 + $0x8] sm:$0xff]
    %v966 = vld [vmem:[%s8 + $0x10] sm:$0xff]
    %v967 = vld [vmem:[%s8 + $0x18] sm:$0xff]
    %v968 = vld [vmem:[%s8 + $0x20] sm:$0xff]
    %v969 = vld [vmem:[%s8 + $0x28] sm:$0xff]
    %v970 = vld [vmem:[%s8 + $0x30] sm:$0xff]
    %v971 = vld [vmem:[%s8 + $0x38] sm:$0xff]
    %v972 = vld [vmem:[%s8 + $0x40] sm:$0xff]
    %v973 = vld [vmem:[%s8 + $0x48] sm:$0xff]
    %v974 = vld [vmem:[%s8 + $0x50] sm:$0xff]
    %v975 = vld [vmem:[%s8 + $0x58] sm:$0xff]
    %v976 = vld [vmem:[%s8 + $0x60] sm:$0xff]
    %v977 = vld [vmem:[%s8 + $0x68] sm:$0xff]
    %v978 = vld [vmem:[%s8 + $0x70] sm:$0xff]
    %v979 = vld [vmem:[%s8 + $0x78] sm:$0xff]
    %v980 = vld [vmem:[%s9] sm:$0x1]
    %v982 = vlaneseq
    %v983 = vshrl.u32 %v982, 7
    %v984 = vsub.s32 0, %v983
    %v985 = vrot.slane %v980, %v984
    %987 = vmatprep.subr.mxu0 0.0
    %988 = vmatpush1.msra.mxu0 %v964
    %989 = vmatprep.subr.mxu0 0.0
    %990 = vmatpush1.msra.mxu0 %v965
    %991 = vmatprep.subr.mxu0 0.0
    %992 = vmatpush1.msra.mxu0 %v966
    %993 = vmatprep.subr.mxu0 0.0
    %994 = vmatpush1.msra.mxu0 %v967
    %995 = vmatprep.subr.mxu0 0.0
    %996 = vmatpush1.msra.mxu0 %v968
    %997 = vmatprep.subr.mxu0 0.0
    %998 = vmatpush1.msra.mxu0 %v969
    %999 = vmatprep.subr.mxu0 0.0
    %1000 = vmatpush1.msra.mxu0 %v970
    %1001 = vmatprep.subr.mxu0 0.0
    %1002 = vmatpush1.msra.mxu0 %v971
    %1003 = vmatprep.subr.mxu0 0.0
    %1004 = vmatpush1.msra.mxu0 %v972
    %1005 = vmatprep.subr.mxu0 0.0
    %1006 = vmatpush1.msra.mxu0 %v973
    %1007 = vmatprep.subr.mxu0 0.0
    %1008 = vmatpush1.msra.mxu0 %v974
    %1009 = vmatprep.subr.mxu0 0.0
    %1010 = vmatpush1.msra.mxu0 %v975
    %1011 = vmatprep.subr.mxu0 0.0
    %1012 = vmatpush1.msra.mxu0 %v976
    %1013 = vmatprep.subr.mxu0 0.0
    %1014 = vmatpush1.msra.mxu0 %v977
    %1015 = vmatprep.subr.mxu0 0.0
    %1016 = vmatpush1.msra.mxu0 %v978
    %1017 = vmatprep.subr.mxu0 0.0
    %1018 = vmatpush1.msra.mxu0 %v979
    %1019 = vmatprep.subr.mxu0 0.0
    %1020 = vmatpush1.msra.mxu0 0.0
    %1021 = vmatprep.subr.mxu0 0.0
    %1022 = vmatpush1.msra.mxu0 0.0
    %1023 = vmatprep.subr.mxu0 0.0
    %1024 = vmatpush1.msra.mxu0 0.0
    %1025 = vmatprep.subr.mxu0 0.0
    %1026 = vmatpush1.msra.mxu0 0.0
    %1027 = vmatprep.subr.mxu0 0.0
    %1028 = vmatpush1.msra.mxu0 0.0
    %1029 = vmatprep.subr.mxu0 0.0
    %1030 = vmatpush1.msra.mxu0 0.0
    %1031 = vmatprep.subr.mxu0 0.0
    %1032 = vmatpush1.msra.mxu0 0.0
    %1033 = vmatprep.subr.mxu0 0.0
    %1034 = vmatpush1.msra.mxu0 0.0
    %1035 = vmatprep.subr.mxu0 0.0
    %1036 = vmatpush1.msra.mxu0 0.0
    %1037 = vmatprep.subr.mxu0 0.0
    %1038 = vmatpush1.msra.mxu0 0.0
    %1039 = vmatprep.subr.mxu0 0.0
    %1040 = vmatpush1.msra.mxu0 0.0
    %1041 = vmatprep.subr.mxu0 0.0
    %1042 = vmatpush1.msra.mxu0 0.0
    %1043 = vmatprep.subr.mxu0 0.0
    %1044 = vmatpush1.msra.mxu0 0.0
    %1045 = vmatprep.subr.mxu0 0.0
    %1046 = vmatpush1.msra.mxu0 0.0
    %1047 = vmatprep.subr.mxu0 0.0
    %1048 = vmatpush1.msra.mxu0 0.0
    %1049 = vmatprep.subr.mxu0 0.0
    %1050 = vmatpush1.msra.mxu0 0.0
    %1051 = vmatprep.mubr.f32.mxu0 0.0
    %1052 = vmatmul.mubr.f32.gmra.mrb[0].mxu0 %v956
    %v1053 = vpop.f32.mrb[0].mxu0
    %v1054 = vadd.f32 %v985, %v1053
    %v1055 = vpop.f32.mrb[0].mxu0
    %1056 = vmatprep.mubr.f32.mxu0 0.0
    %1057 = vmatmul.mubr.f32.gmra.mrb[0].mxu0 %v957
    %v1058 = vpop.f32.mrb[0].mxu0
    %v1059 = vadd.f32 %v985, %v1058
    %v1060 = vpop.f32.mrb[0].mxu0
    %1061 = vmatprep.mubr.f32.mxu0 0.0
    %1062 = vmatmul.mubr.f32.gmra.mrb[0].mxu0 %v958
    %v1063 = vpop.f32.mrb[0].mxu0
    %v1064 = vadd.f32 %v985, %v1063
    %v1065 = vpop.f32.mrb[0].mxu0
    %1066 = vmatprep.mubr.f32.mxu0 0.0
    %1067 = vmatmul.mubr.f32.gmra.mrb[0].mxu0 %v959
    %v1068 = vpop.f32.mrb[0].mxu0
    %v1069 = vadd.f32 %v985, %v1068
    %v1070 = vpop.f32.mrb[0].mxu0
    %1071 = vmatprep.mubr.f32.mxu0 0.0
    %1072 = vmatmul.mubr.f32.gmra.mrb[0].mxu0 %v960
    %v1073 = vpop.f32.mrb[0].mxu0
    %v1074 = vadd.f32 %v985, %v1073
    %v1075 = vpop.f32.mrb[0].mxu0
    %1076 = vmatprep.mubr.f32.mxu0 0.0
    %1077 = vmatmul.mubr.f32.gmra.mrb[0].mxu0 %v961
    %v1078 = vpop.f32.mrb[0].mxu0
    %v1079 = vadd.f32 %v985, %v1078
    %v1080 = vpop.f32.mrb[0].mxu0
    %1081 = vmatprep.mubr.f32.mxu0 0.0
    %1082 = vmatmul.mubr.f32.gmra.mrb[0].mxu0 %v962
    %v1083 = vpop.f32.mrb[0].mxu0
    %v1084 = vadd.f32 %v985, %v1083
    %v1085 = vpop.f32.mrb[0].mxu0
    %1086 = vmatprep.mubr.f32.mxu0 0.0
    %1087 = vmatmul.mubr.f32.gmra.mrb[0].mxu0 %v963
    %v1088 = vpop.f32.mrb[0].mxu0
    %v1089 = vadd.f32 %v985, %v1088
    %v1090 = vpop.f32.mrb[0].mxu0
    %1091 = vdwg.mxu0
    %1092 = vst [vmem:[%s10] sm:$0xff] %v1054
    %1093 = vst [vmem:[%s10 + $0x8] sm:$0xff] %v1059
    %1094 = vst [vmem:[%s10 + $0x10] sm:$0xff] %v1064
    %1095 = vst [vmem:[%s10 + $0x18] sm:$0xff] %v1069
    %1096 = vst [vmem:[%s10 + $0x20] sm:$0xff] %v1074
    %1097 = vst [vmem:[%s10 + $0x28] sm:$0xff] %v1079
    %1098 = vst [vmem:[%s10 + $0x30] sm:$0xff] %v1084
    %1099 = vst [vmem:[%s10 + $0x38] sm:$0xff] %v1089
    // Predicated region
    $region57: #{drqn_mlp_forward.1} parent=1 // pred_check
      _
    $region58: #{drqn_mlp_forward.1} parent=1 // pred_check_branch
      %1101 = sbr.rel (0) target = $region60
    $region59: #{drqn_mlp_forward.1} parent=1 // pred_region
      _
    $region60: #{drqn_mlp_forward.1} parent=1 // pred_fallthru
      _
    // Predicated region
    $region61: #{drqn_mlp_forward.1} parent=1 // pred_check
      _
    $region62: #{drqn_mlp_forward.1} parent=1 // pred_check_branch
      %1103 = sbr.rel (0) target = $region64
    $region63: #{drqn_mlp_forward.1} parent=1 // pred_region
      _
    $region64: #{drqn_mlp_forward.1} parent=1 // pred_fallthru
      _
    // Predicated region
    $region65: #{drqn_mlp_forward.1} parent=1 // pred_check
      _
    $region66: #{drqn_mlp_forward.1} parent=1 // pred_check_branch
      %1105 = sbr.rel (0) target = $region68
    $region67: #{drqn_mlp_forward.1} parent=1 // pred_region
      _
    $region68: #{drqn_mlp_forward.1} parent=1 // pred_fallthru
      _
    // Predicated region
    $region69: #{drqn_mlp_forward.1} parent=1 // pred_check
      _
    $region70: #{drqn_mlp_forward.1} parent=1 // pred_check_branch
      %1107 = sbr.rel (0) target = $region72
    $region71: #{drqn_mlp_forward.1} parent=1 // pred_region
      _
    $region72: #{drqn_mlp_forward.1} parent=1 // pred_fallthru
      _
    // Predicated region
    $region73: #{drqn_mlp_forward.1} parent=1 // pred_check
      _
    $region74: #{drqn_mlp_forward.1} parent=1 // pred_check_branch
      %1109 = sbr.rel (0) target = $region76
    $region75: #{drqn_mlp_forward.1} parent=1 // pred_region
      _
    $region76: #{drqn_mlp_forward.1} parent=1 // pred_fallthru
      _
    // Predicated region
    $region77: #{drqn_mlp_forward.1} parent=1 // pred_check
      _
    $region78: #{drqn_mlp_forward.1} parent=1 // pred_check_branch
      %1111 = sbr.rel (0) target = $region80
    $region79: #{drqn_mlp_forward.1} parent=1 // pred_region
      _
    $region80: #{drqn_mlp_forward.1} parent=1 // pred_fallthru
      _
    %1112 = vsyncpa [#allocation5], 1
    %1113 = vsyncpa [#allocation7], 1

</llo_original>
